<compile_context>
chip_gen: v7x
topology: tpu7x:2x2x1
jax: 0.10.0
libtpu: 0.0.40
codegen_flags: <defaults>
</compile_context>

<pallas_src>
import functools

import jax
import jax.numpy as jnp
from jax import lax
from jax.experimental import pallas as pl
from jax.experimental.pallas import tpu as pltpu

KERNEL_SIZE = 5


# ----------------------------- fused Pallas kernel ---------------------------

def _fused_forward_kernel(xs_ref, w1b_ref, w2b_ref, b2_ref, fcw_ref, fcb_ref,
                          o_ref, *, nb, nk, c2):
    """conv1(5x5,pad2)+ReLU -> maxpool2x2 -> conv2(5x5)+bias+ReLU -> GAP -> FC."""
    f32 = jnp.float32
    lq = 16 * nk                      # lanes per pool quadrant: (w, c1) folded

    # ---- conv1 + ReLU + 2x2 max-pool: one banded matmul per input phase ----
    # xs_ref[2p+q] rows are (n, pooled_row a), K = (row-offset a0, col v0, cin).
    # w1b packs the 4 pool quadrants on N, each 16*nk lanes = (pooled col b, k).
    acc = jnp.dot(xs_ref[0], w1b_ref[0], preferred_element_type=f32)
    for pq in range(1, 4):
        acc = acc + jnp.dot(xs_ref[pq], w1b_ref[pq], preferred_element_type=f32)
    # Quadrant reduction: 128-aligned lane-group slices (free) + 3 maxes + ReLU.
    pooled = jnp.maximum(
        jnp.maximum(acc[:, 0 * lq:1 * lq], acc[:, 1 * lq:2 * lq]),
        jnp.maximum(acc[:, 2 * lq:3 * lq], acc[:, 3 * lq:4 * lq]))
    pooled = jnp.maximum(pooled, 0.0)                 # (nb*16, 16*nk) lane-dense

    # ---- conv2 (valid 5x5): one banded matmul per kernel row ---------------
    # w2b[di] is (16*nk, 12*c2): column taps placed diagonally, so only the
    # 12 valid output columns are produced (no scratch columns / masks).
    parts = [
        jnp.dot(pooled, w2b_ref[di], preferred_element_type=f32)
           .reshape(nb, 16, 12 * c2)
        for di in range(5)
    ]
    y2 = parts[0][:, 0:12]
    for di in range(1, 5):
        y2 = y2 + parts[di][:, di:di + 12]            # small shifted adds
    y2 = jnp.maximum(y2 + b2_ref[...], 0.0)           # (nb, 12, 12*c2)

    # ---- GAP + FC -----------------------------------------------------------
    # W-sum and 1/144 scale are folded into fcw (replicated over the 12 cols);
    # only the H-sum remains here.
    hsum = jnp.sum(y2, axis=1)                        # (nb, 12*c2)
    logits = jnp.dot(hsum, fcw_ref[...], preferred_element_type=f32) + fcb_ref[...]
    o_ref[...] = logits[None].astype(o_ref.dtype)


# ----------------------------- wrapper-side packing --------------------------

def _pack_conv1(w1, nk):
    """Banded conv1 weight: (4 phases, 162, 4 quadrants * 16 cols * nk)."""
    w1t = jnp.transpose(w1, (2, 3, 1, 0))             # (5, 5, 3, nk) [di,dj,c,k]
    p  = jnp.arange(2).reshape(2, 1, 1, 1, 1, 1, 1, 1)
    q  = jnp.arange(2).reshape(1, 2, 1, 1, 1, 1, 1, 1)
    a0 = jnp.arange(3).reshape(1, 1, 3, 1, 1, 1, 1, 1)
    v0 = jnp.arange(18).reshape(1, 1, 1, 18, 1, 1, 1, 1)
    c  = jnp.arange(3).reshape(1, 1, 1, 1, 3, 1, 1, 1)
    ph = jnp.arange(2).reshape(1, 1, 1, 1, 1, 2, 1, 1)
    pw = jnp.arange(2).reshape(1, 1, 1, 1, 1, 1, 2, 1)
    b  = jnp.arange(16).reshape(1, 1, 1, 1, 1, 1, 1, 16)
    di = 2 * a0 + p - ph                               # kernel row tap
    dj = 2 * (v0 - b) + q - pw                         # kernel col tap
    valid = (di >= 0) & (di <= 4) & (dj >= 0) & (dj <= 4)
    di, dj, c, valid = jnp.broadcast_arrays(di, dj, c, valid)
    vals = w1t[jnp.clip(di, 0, 4), jnp.clip(dj, 0, 4), c]      # (..., nk)
    vals = jnp.where(valid[..., None], vals, 0.0)
    return vals.reshape(4, 3 * 18 * 3, 4 * 16 * nk)


def _pack_conv2(w2, nk, c2):
    """Banded conv2 weight per kernel row: (5, 16*nk, 12*c2)."""
    w2t = jnp.transpose(w2, (2, 3, 1, 0))              # (5, 5, nk, c2) [di,dj,ci,co]
    di = jnp.arange(5).reshape(5, 1, 1, 1)
    wi = jnp.arange(16).reshape(1, 16, 1, 1)
    ci = jnp.arange(nk).reshape(1, 1, nk, 1)
    wo = jnp.arange(12).reshape(1, 1, 1, 12)
    dj = wi - wo
    valid = (dj >= 0) & (dj <= 4)
    di, dj, ci, valid = jnp.broadcast_arrays(di, dj, ci, valid)
    vals = w2t[di, jnp.clip(dj, 0, 4), ci]             # (5, 16, nk, 12, c2)
    vals = jnp.where(valid[..., None], vals, 0.0)
    return vals.reshape(5, 16 * nk, 12 * c2)


def _pack_input(x_nchw):
    """Phase-split, row-offset-folded conv1 LHS: (4, N*16, 3*18*3)."""
    n = x_nchw.shape[0]
    x = jnp.transpose(x_nchw, (0, 2, 3, 1)).astype(jnp.float32)   # NHWC
    xpad = jnp.pad(x, ((0, 0), (2, 2), (2, 2), (0, 0)))           # (N, 36, 36, 3)
    # xph[p, q, n, u, v, c] = xpad[n, 2u+p, 2v+q, c]
    xph = xpad.reshape(n, 18, 2, 18, 2, 3).transpose(2, 4, 0, 1, 3, 5)
    # lhs[p, q, n, a, a0, v, c] = xph[p, q, n, a+a0, v, c]
    lhs = jnp.stack([xph[:, :, :, a0:a0 + 16] for a0 in range(3)], axis=4)
    return lhs.reshape(4, n * 16, 3 * 18 * 3)


# --------------------------------- forward -----------------------------------

@functools.partial(jax.jit, static_argnums=(2, 3, 4, 5))
def forward(params, x_nchw, nkernels, nclasses, n_mut1, n_mut2):
    n, cin, h, w = x_nchw.shape
    assert cin == 3 and h == 32 and w == 32, "model geometry requires 3x32x32"
    c2 = nkernels // 2

    # Layer-1 weight = torch.cat([nomut, mut1, mut2], dim=0)   (OIHW)
    w1_list = [params["genome_nomut"]]
    if n_mut1:
        w1_list.append(params["genome_mut1"])
    if n_mut2:
        w1_list.append(params["genome_mut2"])
    w1 = jnp.concatenate(w1_list, axis=0)                         # (nk, 3, 5, 5)

    w1b = _pack_conv1(w1, nkernels)                               # (4, 162, 64*nk)
    w2b = _pack_conv2(params["conv2_w"], nkernels, c2)            # (5, 16*nk, 12*c2)
    b2 = jnp.tile(params["conv2_b"], 12).reshape(1, 12 * c2)      # bias over (wo, co)
    fcw = jnp.tile(jnp.transpose(params["fc_w"]) * (1.0 / 144.0), (12, 1))
    fcb = params["fc_b"].reshape(1, nclasses)

    xs = _pack_input(x_nchw)                                      # (4, n*16, 162)

    # Batch block: at least 2 grid steps when possible (megacore on v7x),
    # capped at 8 samples/step; shapes inside the kernel use nb, not n.
    nb = next((v for v in (8, 4, 2, 1) if n % v == 0 and n // v >= 2), n)
    grid = (n // nb,)
    lq4 = 4 * 16 * nkernels

    kernel = functools.partial(_fused_forward_kernel, nb=nb, nk=nkernels, c2=c2)
    out = pl.pallas_call(
        kernel,
        grid=grid,
        in_specs=[
            pl.BlockSpec((4, nb * 16, 162), lambda i: (0, i, 0)),
            pl.BlockSpec((4, 162, lq4), lambda i: (0, 0, 0)),
            pl.BlockSpec((5, 16 * nkernels, 12 * c2), lambda i: (0, 0, 0)),
            pl.BlockSpec((1, 12 * c2), lambda i: (0, 0)),
            pl.BlockSpec((12 * c2, nclasses), lambda i: (0, 0)),
            pl.BlockSpec((1, nclasses), lambda i: (0, 0)),
        ],
        out_specs=pl.BlockSpec((1, nb, nclasses), lambda i: (i, 0, 0)),
        out_shape=jax.ShapeDtypeStruct((n // nb, nb, nclasses), jnp.float32),
        compiler_params=pltpu.CompilerParams(
            dimension_semantics=("parallel",)),
    )(xs, w1b, w2b, b2, fcw, fcb)
    return out.reshape(n, nclasses)


# ----------------------------- params / reference ----------------------------

def init_params(key, nkernels, nclasses, n_mut1, n_mut2):
    nomut = nkernels - n_mut1 - n_mut2
    ks = jax.random.split(key, 7)

    def conv_w(k, cout, cin):
        bound = 1.0 / jnp.sqrt(cin * KERNEL_SIZE * KERNEL_SIZE)
        return jax.random.uniform(k, (cout, cin, KERNEL_SIZE, KERNEL_SIZE),
                                  jnp.float32, -bound, bound)

    c2 = nkernels // 2
    return {
        "genome_nomut": conv_w(ks[0], nomut, 3),
        "genome_mut1": conv_w(ks[1], n_mut1, 3) if n_mut1 else None,
        "genome_mut2": conv_w(ks[2], n_mut2, 3) if n_mut2 else None,
        "conv2_w": conv_w(ks[3], c2, nkernels),
        "conv2_b": jax.random.uniform(ks[4], (c2,), jnp.float32, -0.1, 0.1),
        "fc_w": jax.random.uniform(ks[5], (nclasses, c2), jnp.float32, -0.5, 0.5),
        "fc_b": jax.random.uniform(ks[6], (nclasses,), jnp.float32, -0.5, 0.5),
    }


def reference_forward(params, x_nchw, n_mut1, n_mut2):
    """Independent pure-JAX reference (XLA convs) for correctness checking."""
    w1_list = [params["genome_nomut"]]
    if n_mut1:
        w1_list.append(params["genome_mut1"])
    if n_mut2:
        w1_list.append(params["genome_mut2"])
    w1 = jnp.concatenate(w1_list, axis=0)
    dn = ("NCHW", "OIHW", "NCHW")
    y = lax.conv_general_dilated(x_nchw, w1, (1, 1), [(2, 2), (2, 2)],
                                 dimension_numbers=dn)
    y = jax.nn.relu(y)
    y = lax.reduce_window(y, -jnp.inf, lax.max, (1, 1, 2, 2), (1, 1, 2, 2), "VALID")
    y = lax.conv_general_dilated(y, params["conv2_w"], (1, 1), "VALID",
                                 dimension_numbers=dn)
    y = jax.nn.relu(y + params["conv2_b"][None, :, None, None])
    y = jnp.mean(y, axis=(2, 3))                       # AvgPool2d(12) + squeeze
    return y @ params["fc_w"].T + params["fc_b"]


# --------------------------------- main --------------------------------------

if __name__ == "__main__":
    nkernels, nclasses, n_mut1, n_mut2 = 8, 10, 2, 2
    batch = 4                                          # -> 2 grid steps of 2 samples

    key = jax.random.PRNGKey(0)
    k_params, k_x = jax.random.split(key)
    params = init_params(k_params, nkernels, nclasses, n_mut1, n_mut2)
    # Input must be 32x32 so that conv->pool->conv yields 12x12 for AvgPool2d(12).
    x = jax.random.normal(k_x, (batch, 3, 32, 32), dtype=jnp.float32)

    out = forward(params, x, nkernels, nclasses, n_mut1, n_mut2)
    out = jax.block_until_ready(out)

    ref = jax.block_until_ready(reference_forward(params, x, n_mut1, n_mut2))
    assert out.shape == (batch, nclasses)
    assert jnp.allclose(out, ref, rtol=1e-3, atol=1e-3), (out, ref)

    print("KERNEL_OK")
</pallas_src>

<mosaic_0001>
module attributes {stable_mosaic.version = 11 : i64} {
  func.func @_fused_forward_kernel(%arg0: i32, %arg1: memref<4x32x162xf32, #tpu.memory_space<vmem>>, %arg2: memref<4x162x512xf32, #tpu.memory_space<vmem>>, %arg3: memref<5x128x48xf32, #tpu.memory_space<vmem>>, %arg4: memref<1x48xf32, #tpu.memory_space<vmem>>, %arg5: memref<48x10xf32, #tpu.memory_space<vmem>>, %arg6: memref<1x10xf32, #tpu.memory_space<vmem>>, %arg7: memref<1x2x10xf32, #tpu.memory_space<vmem>>) attributes {dimension_semantics = [#tpu.dimension_semantics<parallel>], iteration_bounds = array<i64: 2>, scalar_prefetch = 0 : i64, scratch_operands = 0 : i64, tpu.core_type = #tpu.core_type<tc>, window_params = [{transform_indices = @transform_0, window_bounds = array<i64: 4, 32, 162>}, {pipeline_mode = #tpu.pipeline_mode<synchronous>, transform_indices = @transform_1, window_bounds = array<i64: 4, 162, 512>}, {pipeline_mode = #tpu.pipeline_mode<synchronous>, transform_indices = @transform_2, window_bounds = array<i64: 5, 128, 48>}, {pipeline_mode = #tpu.pipeline_mode<synchronous>, transform_indices = @transform_3, window_bounds = array<i64: 1, 48>}, {pipeline_mode = #tpu.pipeline_mode<synchronous>, transform_indices = @transform_4, window_bounds = array<i64: 48, 10>}, {pipeline_mode = #tpu.pipeline_mode<synchronous>, transform_indices = @transform_5, window_bounds = array<i64: 1, 10>}, {transform_indices = @transform_6, window_bounds = array<i64: 1, 2, 10>}]} {
    %c0 = arith.constant 0 : index
    %c0_0 = arith.constant 0 : index
    %c0_1 = arith.constant 0 : index
    %0 = vector.load %arg1[%c0, %c0_0, %c0_1] : memref<4x32x162xf32, #tpu.memory_space<vmem>>, vector<1x32x162xf32>
    %1 = vector.shape_cast %0 : vector<1x32x162xf32> to vector<32x162xf32>
    %c0_2 = arith.constant 0 : index
    %c0_3 = arith.constant 0 : index
    %c0_4 = arith.constant 0 : index
    %2 = vector.load %arg2[%c0_2, %c0_3, %c0_4] : memref<4x162x512xf32, #tpu.memory_space<vmem>>, vector<1x162x512xf32>
    %3 = vector.shape_cast %2 : vector<1x162x512xf32> to vector<162x512xf32>
    %cst = arith.constant dense<0.000000e+00> : vector<32x512xf32>
    %4 = tpu.matmul %1, %3, %cst {dimension_numbers = #tpu.dot_dimension_numbers<[1], [0], [0], [1], [0, 0, 1, 1], [], []>} : vector<32x162xf32>, vector<162x512xf32>, vector<32x512xf32> -> vector<32x512xf32>
    %c1 = arith.constant 1 : index
    %c0_5 = arith.constant 0 : index
    %c0_6 = arith.constant 0 : index
    %5 = vector.load %arg1[%c1, %c0_5, %c0_6] : memref<4x32x162xf32, #tpu.memory_space<vmem>>, vector<1x32x162xf32>
    %6 = vector.shape_cast %5 : vector<1x32x162xf32> to vector<32x162xf32>
    %c1_7 = arith.constant 1 : index
    %c0_8 = arith.constant 0 : index
    %c0_9 = arith.constant 0 : index
    %7 = vector.load %arg2[%c1_7, %c0_8, %c0_9] : memref<4x162x512xf32, #tpu.memory_space<vmem>>, vector<1x162x512xf32>
    %8 = vector.shape_cast %7 : vector<1x162x512xf32> to vector<162x512xf32>
    %cst_10 = arith.constant dense<0.000000e+00> : vector<32x512xf32>
    %9 = tpu.matmul %6, %8, %cst_10 {dimension_numbers = #tpu.dot_dimension_numbers<[1], [0], [0], [1], [0, 0, 1, 1], [], []>} : vector<32x162xf32>, vector<162x512xf32>, vector<32x512xf32> -> vector<32x512xf32>
    %10 = arith.addf %4, %9 : vector<32x512xf32>
    %c2 = arith.constant 2 : index
    %c0_11 = arith.constant 0 : index
    %c0_12 = arith.constant 0 : index
    %11 = vector.load %arg1[%c2, %c0_11, %c0_12] : memref<4x32x162xf32, #tpu.memory_space<vmem>>, vector<1x32x162xf32>
    %12 = vector.shape_cast %11 : vector<1x32x162xf32> to vector<32x162xf32>
    %c2_13 = arith.constant 2 : index
    %c0_14 = arith.constant 0 : index
    %c0_15 = arith.constant 0 : index
    %13 = vector.load %arg2[%c2_13, %c0_14, %c0_15] : memref<4x162x512xf32, #tpu.memory_space<vmem>>, vector<1x162x512xf32>
    %14 = vector.shape_cast %13 : vector<1x162x512xf32> to vector<162x512xf32>
    %cst_16 = arith.constant dense<0.000000e+00> : vector<32x512xf32>
    %15 = tpu.matmul %12, %14, %cst_16 {dimension_numbers = #tpu.dot_dimension_numbers<[1], [0], [0], [1], [0, 0, 1, 1], [], []>} : vector<32x162xf32>, vector<162x512xf32>, vector<32x512xf32> -> vector<32x512xf32>
    %16 = arith.addf %10, %15 : vector<32x512xf32>
    %c3 = arith.constant 3 : index
    %c0_17 = arith.constant 0 : index
    %c0_18 = arith.constant 0 : index
    %17 = vector.load %arg1[%c3, %c0_17, %c0_18] : memref<4x32x162xf32, #tpu.memory_space<vmem>>, vector<1x32x162xf32>
    %18 = vector.shape_cast %17 : vector<1x32x162xf32> to vector<32x162xf32>
    %c3_19 = arith.constant 3 : index
    %c0_20 = arith.constant 0 : index
    %c0_21 = arith.constant 0 : index
    %19 = vector.load %arg2[%c3_19, %c0_20, %c0_21] : memref<4x162x512xf32, #tpu.memory_space<vmem>>, vector<1x162x512xf32>
    %20 = vector.shape_cast %19 : vector<1x162x512xf32> to vector<162x512xf32>
    %cst_22 = arith.constant dense<0.000000e+00> : vector<32x512xf32>
    %21 = tpu.matmul %18, %20, %cst_22 {dimension_numbers = #tpu.dot_dimension_numbers<[1], [0], [0], [1], [0, 0, 1, 1], [], []>} : vector<32x162xf32>, vector<162x512xf32>, vector<32x512xf32> -> vector<32x512xf32>
    %22 = arith.addf %16, %21 : vector<32x512xf32>
    %23 = vector.extract_strided_slice %22 {offsets = [0, 0], sizes = [32, 128], strides = [1, 1]} : vector<32x512xf32> to vector<32x128xf32>
    %24 = vector.extract_strided_slice %22 {offsets = [0, 128], sizes = [32, 128], strides = [1, 1]} : vector<32x512xf32> to vector<32x128xf32>
    %25 = arith.maximumf %23, %24 : vector<32x128xf32>
    %26 = vector.extract_strided_slice %22 {offsets = [0, 256], sizes = [32, 128], strides = [1, 1]} : vector<32x512xf32> to vector<32x128xf32>
    %27 = vector.extract_strided_slice %22 {offsets = [0, 384], sizes = [32, 128], strides = [1, 1]} : vector<32x512xf32> to vector<32x128xf32>
    %28 = arith.maximumf %26, %27 : vector<32x128xf32>
    %29 = arith.maximumf %25, %28 : vector<32x128xf32>
    %cst_23 = arith.constant 0.000000e+00 : f32
    %30 = vector.broadcast %cst_23 : f32 to vector<32x128xf32>
    %31 = arith.maximumf %29, %30 : vector<32x128xf32>
    %c0_24 = arith.constant 0 : index
    %c0_25 = arith.constant 0 : index
    %c0_26 = arith.constant 0 : index
    %32 = vector.load %arg3[%c0_24, %c0_25, %c0_26] : memref<5x128x48xf32, #tpu.memory_space<vmem>>, vector<1x128x48xf32>
    %33 = vector.shape_cast %32 : vector<1x128x48xf32> to vector<128x48xf32>
    %cst_27 = arith.constant dense<0.000000e+00> : vector<32x48xf32>
    %34 = tpu.matmul %31, %33, %cst_27 {dimension_numbers = #tpu.dot_dimension_numbers<[1], [0], [0], [1], [0, 0, 1, 1], [], []>} : vector<32x128xf32>, vector<128x48xf32>, vector<32x48xf32> -> vector<32x48xf32>
    %35 = vector.shape_cast %34 : vector<32x48xf32> to vector<2x16x48xf32>
    %c1_28 = arith.constant 1 : index
    %c0_29 = arith.constant 0 : index
    %c0_30 = arith.constant 0 : index
    %36 = vector.load %arg3[%c1_28, %c0_29, %c0_30] : memref<5x128x48xf32, #tpu.memory_space<vmem>>, vector<1x128x48xf32>
    %37 = vector.shape_cast %36 : vector<1x128x48xf32> to vector<128x48xf32>
    %cst_31 = arith.constant dense<0.000000e+00> : vector<32x48xf32>
    %38 = tpu.matmul %31, %37, %cst_31 {dimension_numbers = #tpu.dot_dimension_numbers<[1], [0], [0], [1], [0, 0, 1, 1], [], []>} : vector<32x128xf32>, vector<128x48xf32>, vector<32x48xf32> -> vector<32x48xf32>
    %39 = vector.shape_cast %38 : vector<32x48xf32> to vector<2x16x48xf32>
    %c2_32 = arith.constant 2 : index
    %c0_33 = arith.constant 0 : index
    %c0_34 = arith.constant 0 : index
    %40 = vector.load %arg3[%c2_32, %c0_33, %c0_34] : memref<5x128x48xf32, #tpu.memory_space<vmem>>, vector<1x128x48xf32>
    %41 = vector.shape_cast %40 : vector<1x128x48xf32> to vector<128x48xf32>
    %cst_35 = arith.constant dense<0.000000e+00> : vector<32x48xf32>
    %42 = tpu.matmul %31, %41, %cst_35 {dimension_numbers = #tpu.dot_dimension_numbers<[1], [0], [0], [1], [0, 0, 1, 1], [], []>} : vector<32x128xf32>, vector<128x48xf32>, vector<32x48xf32> -> vector<32x48xf32>
    %43 = vector.shape_cast %42 : vector<32x48xf32> to vector<2x16x48xf32>
    %c3_36 = arith.constant 3 : index
    %c0_37 = arith.constant 0 : index
    %c0_38 = arith.constant 0 : index
    %44 = vector.load %arg3[%c3_36, %c0_37, %c0_38] : memref<5x128x48xf32, #tpu.memory_space<vmem>>, vector<1x128x48xf32>
    %45 = vector.shape_cast %44 : vector<1x128x48xf32> to vector<128x48xf32>
    %cst_39 = arith.constant dense<0.000000e+00> : vector<32x48xf32>
    %46 = tpu.matmul %31, %45, %cst_39 {dimension_numbers = #tpu.dot_dimension_numbers<[1], [0], [0], [1], [0, 0, 1, 1], [], []>} : vector<32x128xf32>, vector<128x48xf32>, vector<32x48xf32> -> vector<32x48xf32>
    %47 = vector.shape_cast %46 : vector<32x48xf32> to vector<2x16x48xf32>
    %c4 = arith.constant 4 : index
    %c0_40 = arith.constant 0 : index
    %c0_41 = arith.constant 0 : index
    %48 = vector.load %arg3[%c4, %c0_40, %c0_41] : memref<5x128x48xf32, #tpu.memory_space<vmem>>, vector<1x128x48xf32>
    %49 = vector.shape_cast %48 : vector<1x128x48xf32> to vector<128x48xf32>
    %cst_42 = arith.constant dense<0.000000e+00> : vector<32x48xf32>
    %50 = tpu.matmul %31, %49, %cst_42 {dimension_numbers = #tpu.dot_dimension_numbers<[1], [0], [0], [1], [0, 0, 1, 1], [], []>} : vector<32x128xf32>, vector<128x48xf32>, vector<32x48xf32> -> vector<32x48xf32>
    %51 = vector.shape_cast %50 : vector<32x48xf32> to vector<2x16x48xf32>
    %52 = vector.extract_strided_slice %35 {offsets = [0, 0, 0], sizes = [2, 12, 48], strides = [1, 1, 1]} : vector<2x16x48xf32> to vector<2x12x48xf32>
    %53 = vector.extract_strided_slice %39 {offsets = [0, 1, 0], sizes = [2, 12, 48], strides = [1, 1, 1]} : vector<2x16x48xf32> to vector<2x12x48xf32>
    %54 = arith.addf %52, %53 : vector<2x12x48xf32>
    %55 = vector.extract_strided_slice %43 {offsets = [0, 2, 0], sizes = [2, 12, 48], strides = [1, 1, 1]} : vector<2x16x48xf32> to vector<2x12x48xf32>
    %56 = arith.addf %54, %55 : vector<2x12x48xf32>
    %57 = vector.extract_strided_slice %47 {offsets = [0, 3, 0], sizes = [2, 12, 48], strides = [1, 1, 1]} : vector<2x16x48xf32> to vector<2x12x48xf32>
    %58 = arith.addf %56, %57 : vector<2x12x48xf32>
    %59 = vector.extract_strided_slice %51 {offsets = [0, 4, 0], sizes = [2, 12, 48], strides = [1, 1, 1]} : vector<2x16x48xf32> to vector<2x12x48xf32>
    %60 = arith.addf %58, %59 : vector<2x12x48xf32>
    %c0_43 = arith.constant 0 : index
    %c0_44 = arith.constant 0 : index
    %61 = vector.load %arg4[%c0_43, %c0_44] : memref<1x48xf32, #tpu.memory_space<vmem>>, vector<1x48xf32>
    %62 = vector.shape_cast %61 : vector<1x48xf32> to vector<1x1x48xf32>
    %63 = vector.broadcast %62 : vector<1x1x48xf32> to vector<2x12x48xf32>
    %64 = arith.addf %60, %63 : vector<2x12x48xf32>
    %cst_45 = arith.constant 0.000000e+00 : f32
    %65 = vector.broadcast %cst_45 : f32 to vector<2x12x48xf32>
    %66 = arith.maximumf %64, %65 : vector<2x12x48xf32>
    %cst_46 = arith.constant dense<0.000000e+00> : vector<2x48xf32>
    %67 = vector.multi_reduction <add>, %66, %cst_46 [1] : vector<2x12x48xf32> to vector<2x48xf32>
    %c0_47 = arith.constant 0 : index
    %c0_48 = arith.constant 0 : index
    %68 = vector.load %arg5[%c0_47, %c0_48] : memref<48x10xf32, #tpu.memory_space<vmem>>, vector<48x10xf32>
    %cst_49 = arith.constant dense<0.000000e+00> : vector<2x10xf32>
    %69 = tpu.matmul %67, %68, %cst_49 {dimension_numbers = #tpu.dot_dimension_numbers<[1], [0], [0], [1], [0, 0, 1, 1], [], []>} : vector<2x48xf32>, vector<48x10xf32>, vector<2x10xf32> -> vector<2x10xf32>
    %c0_50 = arith.constant 0 : index
    %c0_51 = arith.constant 0 : index
    %70 = vector.load %arg6[%c0_50, %c0_51] : memref<1x10xf32, #tpu.memory_space<vmem>>, vector<1x10xf32>
    %71 = vector.broadcast %70 : vector<1x10xf32> to vector<2x10xf32>
    %72 = arith.addf %69, %71 : vector<2x10xf32>
    %73 = vector.shape_cast %72 : vector<2x10xf32> to vector<1x2x10xf32>
    %c0_52 = arith.constant 0 : index
    %c0_53 = arith.constant 0 : index
    %c0_54 = arith.constant 0 : index
    %74 = vector.load %arg7[%c0_52, %c0_53, %c0_54] : memref<1x2x10xf32, #tpu.memory_space<vmem>>, vector<1x2x10xf32>
    tpu.vector_store %arg7[%c0_52, %c0_53, %c0_54], %73 {strides = array<i32>} : memref<1x2x10xf32, #tpu.memory_space<vmem>>, vector<1x2x10xf32>,
    return
  }
  func.func @transform_0(%arg0: i32) -> (i32, i32, i32) {
    %c0_i32 = arith.constant 0 : i32
    %c0_i32_0 = arith.constant 0 : i32
    %c0_i32_1 = arith.constant 0 : i32
    return %c0_i32, %arg0, %c0_i32_0 : i32, i32, i32
  }
  func.func @transform_1(%arg0: i32) -> (i32, i32, i32) {
    %c0_i32 = arith.constant 0 : i32
    %c0_i32_0 = arith.constant 0 : i32
    %c0_i32_1 = arith.constant 0 : i32
    %c0_i32_2 = arith.constant 0 : i32
    return %c0_i32, %c0_i32_0, %c0_i32_1 : i32, i32, i32
  }
  func.func @transform_2(%arg0: i32) -> (i32, i32, i32) {
    %c0_i32 = arith.constant 0 : i32
    %c0_i32_0 = arith.constant 0 : i32
    %c0_i32_1 = arith.constant 0 : i32
    %c0_i32_2 = arith.constant 0 : i32
    return %c0_i32, %c0_i32_0, %c0_i32_1 : i32, i32, i32
  }
  func.func @transform_3(%arg0: i32) -> (i32, i32) {
    %c0_i32 = arith.constant 0 : i32
    %c0_i32_0 = arith.constant 0 : i32
    %c0_i32_1 = arith.constant 0 : i32
    return %c0_i32, %c0_i32_0 : i32, i32
  }
  func.func @transform_4(%arg0: i32) -> (i32, i32) {
    %c0_i32 = arith.constant 0 : i32
    %c0_i32_0 = arith.constant 0 : i32
    %c0_i32_1 = arith.constant 0 : i32
    return %c0_i32, %c0_i32_0 : i32, i32
  }
  func.func @transform_5(%arg0: i32) -> (i32, i32) {
    %c0_i32 = arith.constant 0 : i32
    %c0_i32_0 = arith.constant 0 : i32
    %c0_i32_1 = arith.constant 0 : i32
    return %c0_i32, %c0_i32_0 : i32, i32
  }
  func.func @transform_6(%arg0: i32) -> (i32, i32, i32) {
    %c0_i32 = arith.constant 0 : i32
    %c0_i32_0 = arith.constant 0 : i32
    %c0_i32_1 = arith.constant 0 : i32
    return %arg0, %c0_i32, %c0_i32_0 : i32, i32, i32
  }
}

</mosaic_0001>

<llo_original>
// kernel: tile.13
$region0: #{tile.13}
  #allocation0 [shape = 's32[1]{0}', space=sflag, size = 0x4, scoped, tag = 'scoped memory for tile.13']
  %s0 = inlined_call_operand.vmem [shape: f32[4], index: 0, kind: input, shape index: {}]
  %s1 = inlined_call_operand.vmem [shape: f32[12,4], index: 1, kind: output, shape index: {}]
  // Predicated region
  $region2: #{tile.13} parent=0 // pred_check
    _
  $region3: #{tile.13} parent=0 // pred_check_branch
    %3 = sbr.rel (0) target = $region5
  $region4: #{tile.13} parent=0 // pred_region
    _
  $region5: #{tile.13} parent=0 // pred_fallthru
    _
  %v4 = vld [vmem:[%s0] ss:$0 sm:$0xff]
  %5 = vst [vmem:[%s1] sm:$0xff] %v4
  %s6 = scalar_lea.vmem %s1, 8
  %7 = vst [vmem:[%s6] sm:$0xff] %v4

// kernel: tile.14
$region0: #{tile.14}
  %s0 = inlined_call_operand.vmem [shape: f32[12,4], index: 0, kind: input, shape index: {}]
  %s1 = inlined_call_operand.vmem [shape: f32[1,48], index: 1, kind: output, shape index: {}]
  $region1: #{tile.14} parent=0
    #allocation0 [shape = 'u8[4096]{0}', space=vmem, size = 0x1000, scoped, tag = 'scoped mem for output reshape']
    %v2 = vld [vmem:[%s0] sm:$0x1]
    %vm3 = vcmask 31744
    %4 = vst.msk [vmem:[#allocation0] sm:$0x1] %vm3, %v2
    %s5 = scalar_lea.vmem %s0, 11
    %v6 = vld [vmem:[%s5] sm:$0x1]
    %7 = vrot.lane.b32.xlu0 %v6, 44
    %v8 = vpop.permute.xlu0 %7
    %vm9 = vcmask 392544
    %10 = vst.msk [vmem:[#allocation0] sm:$0x1] %vm9, %v8
    %s11 = scalar_lea.vmem %s0, 10
    %v12 = vld [vmem:[%s11] sm:$0x1]
    %13 = vrot.lane.b32.xlu0 %v12, 40
    %v14 = vpop.permute.xlu0 %13
    %vm15 = vcmask 359744
    %16 = vst.msk [vmem:[#allocation0] sm:$0x1] %vm15, %v14
    %s17 = scalar_lea.vmem %s0, 9
    %v18 = vld [vmem:[%s17] sm:$0x1]
    %19 = vrot.lane.b32.xlu0 %v18, 36
    %v20 = vpop.permute.xlu0 %19
    %vm21 = vcmask 326944
    %22 = vst.msk [vmem:[#allocation0] sm:$0x1] %vm21, %v20
    %s23 = scalar_lea.vmem %s0, 8
    %v24 = vld [vmem:[%s23] sm:$0x1]
    %25 = vrot.lane.b32.xlu0 %v24, 32
    %v26 = vpop.permute.xlu0 %25
    %vm27 = vcmask 294144
    %28 = vst.msk [vmem:[#allocation0] sm:$0x1] %vm27, %v26
    %s29 = scalar_lea.vmem %s0, 7
    %v30 = vld [vmem:[%s29] sm:$0x1]
    %31 = vrot.lane.b32.xlu0 %v30, 28
    %v32 = vpop.permute.xlu0 %31
    %vm33 = vcmask 261344
    %34 = vst.msk [vmem:[#allocation0] sm:$0x1] %vm33, %v32
    %s35 = scalar_lea.vmem %s0, 6
    %v36 = vld [vmem:[%s35] sm:$0x1]
    %37 = vrot.lane.b32.xlu0 %v36, 24
    %v38 = vpop.permute.xlu0 %37
    %vm39 = vcmask 228544
    %40 = vst.msk [vmem:[#allocation0] sm:$0x1] %vm39, %v38
    %s41 = scalar_lea.vmem %s0, 5
    %v42 = vld [vmem:[%s41] sm:$0x1]
    %43 = vrot.lane.b32.xlu0 %v42, 20
    %v44 = vpop.permute.xlu0 %43
    %vm45 = vcmask 195744
    %46 = vst.msk [vmem:[#allocation0] sm:$0x1] %vm45, %v44
    %s47 = scalar_lea.vmem %s0, 4
    %v48 = vld [vmem:[%s47] sm:$0x1]
    %49 = vrot.lane.b32.xlu0 %v48, 16
    %v50 = vpop.permute.xlu0 %49
    %vm51 = vcmask 162944
    %52 = vst.msk [vmem:[#allocation0] sm:$0x1] %vm51, %v50
    %s53 = scalar_lea.vmem %s0, 3
    %v54 = vld [vmem:[%s53] sm:$0x1]
    %55 = vrot.lane.b32.xlu0 %v54, 12
    %v56 = vpop.permute.xlu0 %55
    %vm57 = vcmask 130144
    %58 = vst.msk [vmem:[#allocation0] sm:$0x1] %vm57, %v56
    %s59 = scalar_lea.vmem %s0, 2
    %v60 = vld [vmem:[%s59] sm:$0x1]
    %61 = vrot.lane.b32.xlu0 %v60, 8
    %v62 = vpop.permute.xlu0 %61
    %vm63 = vcmask 97344
    %64 = vst.msk [vmem:[#allocation0] sm:$0x1] %vm63, %v62
    %s65 = scalar_lea.vmem %s0, 1
    %v66 = vld [vmem:[%s65] sm:$0x1]
    %67 = vrot.lane.b32.xlu0 %v66, 4
    %v68 = vpop.permute.xlu0 %67
    %vm69 = vcmask 64544
    %70 = vst.msk [vmem:[#allocation0] sm:$0x1] %vm69, %v68
    %s72 = sshllo.u32 0, 1
    %v74 = vld [vmem:[#allocation0] sm:%s72]
    %s75 = sshllo.u32 0, 1
    %76 = vst [vmem:[%s1] sm:%s75] %v74

// kernel: forward.1
$region0: #{forward.1}
  #allocation0 [shape = 'u32[]', space=smem, size = 0x4, offset = 0x4, fixed_abs, tag = 'smem constant byte address 0x4 - core index']
  #allocation1 [shape = 'u32[144,128]{1,0:T(1,128)}', space=vmem, size = 0x12000, scoped, tag = 'internal scratch']
  %s0 = inlined_call_operand.vmem [shape: f32[4,64,162], index: 0, kind: input, shape index: {}]
  %s1 = inlined_call_operand.vmem [shape: f32[4,162,512], index: 1, kind: input, shape index: {}]
  %s2 = inlined_call_operand.vmem [shape: f32[5,128,48], index: 2, kind: input, shape index: {}]
  %s3 = inlined_call_operand.vmem [shape: f32[1,48], index: 3, kind: input, shape index: {}]
  %s4 = inlined_call_operand.vmem [shape: f32[48,10], index: 4, kind: input, shape index: {}]
  %s5 = inlined_call_operand.vmem [shape: f32[1,10], index: 5, kind: input, shape index: {}]
  %s6 = inlined_call_operand.hbm [shape: f32[2,2,10], index: 6, kind: output, shape index: {}]
  %s7 = sld [smem:[#allocation0]]
  $region80: #{forward.1} parent=0
    _
  %s9 = ssub.s32 1, %s7
  %s10 = scalar_select 0, %s9, %s7
  $region1: #{forward.1} parent=0
    #allocation2 [shape = 'u8[262144]{0}', space=vmem, size = 0x40000, scoped, tag = 'input window, operand 0']
    #allocation3 [shape = 'u8[2048]{0}', space=vmem, size = 0x800, scoped, tag = 'output window, operand 0']
    #allocation4 [shape = 's32[2]{0}', space=sflag, size = 0x8, scoped, tag = 'scoped memory for forward.1']
    %11 = vsyncpa [#allocation4], 0
    %s12 = scalar_lea.sflag [#allocation4], 1
    %13 = vsyncpa %s12, 0
    loop: start=0, step=1, limit=4
    $region2: #{forward.1} parent=1 // loop_pre_header
      _
    $region3: #{forward.1} parent=1 // loop_header
      %s15 = sphi 0, %s19
      %p16 = scmp.ge.s32.totalorder %s15, 4
      %s25 = sphi 0, %s27
      %s28 = sphi 0, %s25
      %s29 = sphi 0, %s28
      %s45 = sphi 0, %s29
      %s49 = sphi 0, %s49
      %s51 = sphi 0, %s49
      %s52 = sphi 0, %s51
      %s66 = sphi 0, %s52
      %s70 = sphi 0, %s70
      %s72 = sphi 0, %s70
      %s73 = sphi 0, %s72
      %s87 = sphi 0, %s73
      %s91 = sphi 0, %s91
      %s93 = sphi 0, %s91
      %s94 = sphi 0, %s93
      %s108 = sphi 0, %s94
      %s112 = sphi 0, %s112
      %s114 = sphi 0, %s112
      %s115 = sphi 0, %s114
      %s129 = sphi 0, %s115
      %s133 = sphi 0, %s133
      %s135 = sphi 0, %s133
      %s136 = sphi 0, %s135
      %s150 = sphi 0, %s136
      %s156 = sphi 0, %s158
      %s159 = sphi 0, %s156
      %s160 = sphi 0, %s159
      %s176 = sphi 0, %s160
    $region4: #{forward.1} parent=1 // loop_header_branch
      %18 = sbr.rel (%p16) target = $region8
    $region5: #{forward.1} parent=1 // loop_body
      %s20 = ssub.s32 %s15, 1
      %s21 = ssub.s32 %s15, 2
      %s22 = sadd.s32 %s15, 1
      %s23 = ssub.s32 %s15, %s22
      %p24 = scmp.eq.s32.totalorder %s23, 0
      %s26 = sadd.s32 %s25, 1
      %s27 = scalar_select %p24, %s25, %s26
      %p30 = pneg %p24
      %p31 = scmp.eq.s32.totalorder %s15, 1
      %p32 = por %p30, %p31
      %p33 = scmp.ne.s32.totalorder %s25, %s28
      %p34 = scmp.eq.s32.totalorder %s15, 0
      %p35 = por %p33, %p34
      %p36 = scmp.ne.s32.totalorder %s25, %s28
      %p37 = scmp.eq.s32.totalorder %s20, 1
      %p38 = por %p36, %p37
      %p39 = scmp.ne.s32.totalorder %s28, %s29
      %p40 = scmp.eq.s32.totalorder %s20, 0
      %p41 = por %p39, %p40
      %p42 = scmp.ne.s32.totalorder %s28, %s29
      %p43 = scmp.eq.s32.totalorder %s21, 1
      %p44 = por %p42, %p43
      %p46 = scmp.ne.s32.totalorder %s29, %s45
      %p47 = scmp.eq.s32.totalorder %s21, 0
      %p48 = por %p46, %p47
      %s50 = sadd.s32 %s49, 1
      %p53 = scmp.eq.s32.totalorder %s15, 1
      %p54 = scmp.ne.s32.totalorder %s49, %s51
      %p55 = scmp.eq.s32.totalorder %s15, 0
      %p56 = por %p54, %p55
      %p57 = scmp.ne.s32.totalorder %s49, %s51
      %p58 = scmp.eq.s32.totalorder %s20, 1
      %p59 = por %p57, %p58
      %p60 = scmp.ne.s32.totalorder %s51, %s52
      %p61 = scmp.eq.s32.totalorder %s20, 0
      %p62 = por %p60, %p61
      %p63 = scmp.ne.s32.totalorder %s51, %s52
      %p64 = scmp.eq.s32.totalorder %s21, 1
      %p65 = por %p63, %p64
      %p67 = scmp.ne.s32.totalorder %s52, %s66
      %p68 = scmp.eq.s32.totalorder %s21, 0
      %p69 = por %p67, %p68
      %s71 = sadd.s32 %s70, 1
      %p74 = scmp.eq.s32.totalorder %s15, 1
      %p75 = scmp.ne.s32.totalorder %s70, %s72
      %p76 = scmp.eq.s32.totalorder %s15, 0
      %p77 = por %p75, %p76
      %p78 = scmp.ne.s32.totalorder %s70, %s72
      %p79 = scmp.eq.s32.totalorder %s20, 1
      %p80 = por %p78, %p79
      %p81 = scmp.ne.s32.totalorder %s72, %s73
      %p82 = scmp.eq.s32.totalorder %s20, 0
      %p83 = por %p81, %p82
      %p84 = scmp.ne.s32.totalorder %s72, %s73
      %p85 = scmp.eq.s32.totalorder %s21, 1
      %p86 = por %p84, %p85
      %p88 = scmp.ne.s32.totalorder %s73, %s87
      %p89 = scmp.eq.s32.totalorder %s21, 0
      %p90 = por %p88, %p89
      %s92 = sadd.s32 %s91, 1
      %p95 = scmp.eq.s32.totalorder %s15, 1
      %p96 = scmp.ne.s32.totalorder %s91, %s93
      %p97 = scmp.eq.s32.totalorder %s15, 0
      %p98 = por %p96, %p97
      %p99 = scmp.ne.s32.totalorder %s91, %s93
      %p100 = scmp.eq.s32.totalorder %s20, 1
      %p101 = por %p99, %p100
      %p102 = scmp.ne.s32.totalorder %s93, %s94
      %p103 = scmp.eq.s32.totalorder %s20, 0
      %p104 = por %p102, %p103
      %p105 = scmp.ne.s32.totalorder %s93, %s94
      %p106 = scmp.eq.s32.totalorder %s21, 1
      %p107 = por %p105, %p106
      %p109 = scmp.ne.s32.totalorder %s94, %s108
      %p110 = scmp.eq.s32.totalorder %s21, 0
      %p111 = por %p109, %p110
      %s113 = sadd.s32 %s112, 1
      %p116 = scmp.eq.s32.totalorder %s15, 1
      %p117 = scmp.ne.s32.totalorder %s112, %s114
      %p118 = scmp.eq.s32.totalorder %s15, 0
      %p119 = por %p117, %p118
      %p120 = scmp.ne.s32.totalorder %s112, %s114
      %p121 = scmp.eq.s32.totalorder %s20, 1
      %p122 = por %p120, %p121
      %p123 = scmp.ne.s32.totalorder %s114, %s115
      %p124 = scmp.eq.s32.totalorder %s20, 0
      %p125 = por %p123, %p124
      %p126 = scmp.ne.s32.totalorder %s114, %s115
      %p127 = scmp.eq.s32.totalorder %s21, 1
      %p128 = por %p126, %p127
      %p130 = scmp.ne.s32.totalorder %s115, %s129
      %p131 = scmp.eq.s32.totalorder %s21, 0
      %p132 = por %p130, %p131
      %s134 = sadd.s32 %s133, 1
      %p137 = scmp.eq.s32.totalorder %s15, 1
      %p138 = scmp.ne.s32.totalorder %s133, %s135
      %p139 = scmp.eq.s32.totalorder %s15, 0
      %p140 = por %p138, %p139
      %p141 = scmp.ne.s32.totalorder %s133, %s135
      %p142 = scmp.eq.s32.totalorder %s20, 1
      %p143 = por %p141, %p142
      %p144 = scmp.ne.s32.totalorder %s135, %s136
      %p145 = scmp.eq.s32.totalorder %s20, 0
      %p146 = por %p144, %p145
      %p147 = scmp.ne.s32.totalorder %s135, %s136
      %p148 = scmp.eq.s32.totalorder %s21, 1
      %p149 = por %p147, %p148
      %p151 = scmp.ne.s32.totalorder %s136, %s150
      %p152 = scmp.eq.s32.totalorder %s21, 0
      %p153 = por %p151, %p152
      %s154 = ssub.s32 %s15, %s22
      %p155 = scmp.eq.s32.totalorder %s154, 0
      %s157 = sadd.s32 %s156, 1
      %s158 = scalar_select %p155, %s156, %s157
      %p161 = pneg %p155
      %p162 = scmp.eq.s32.totalorder %s15, 1
      %p163 = por %p161, %p162
      %p164 = scmp.ne.s32.totalorder %s156, %s159
      %p165 = scmp.eq.s32.totalorder %s15, 0
      %p166 = por %p164, %p165
      %p167 = scmp.ne.s32.totalorder %s156, %s159
      %p168 = scmp.eq.s32.totalorder %s20, 1
      %p169 = por %p167, %p168
      %p170 = scmp.ne.s32.totalorder %s159, %s160
      %p171 = scmp.eq.s32.totalorder %s20, 0
      %p172 = por %p170, %p171
      %p173 = scmp.ne.s32.totalorder %s159, %s160
      %p174 = scmp.eq.s32.totalorder %s21, 1
      %p175 = por %p173, %p174
      %p177 = scmp.ne.s32.totalorder %s160, %s176
      %p178 = scmp.eq.s32.totalorder %s21, 0
      %p179 = por %p177, %p178
      %p180 = scmp.le.s32.totalorder 1, %s15
      %p181 = scmp.lt.s32.totalorder %s15, 3
      %p182 = pnand %p180, %p181
      %p183 = pneg %p182
      // Predicated region
      $region9: #{forward.1} parent=5 // pred_check
        _
      $region10: #{forward.1} parent=5 // pred_check_branch
        %185 = sbr.rel (%p182) target = $region12
      $region11: #{forward.1} parent=5 // pred_region
        %s186 = ssub.s32 %s15, 1
        // Predicated region
        $region13: #{forward.1} parent=11 // pred_check
          %p187 = pneg %p62
        $region14: #{forward.1} parent=11 // pred_check_branch
          %189 = sbr.rel (%p187) target = $region16
        $region15: #{forward.1} parent=11 // pred_region
          _
        $region16: #{forward.1} parent=11 // pred_fallthru
          _
        // Predicated region
        $region17: #{forward.1} parent=11 // pred_check
          %p190 = pneg %p83
        $region18: #{forward.1} parent=11 // pred_check_branch
          %192 = sbr.rel (%p190) target = $region20
        $region19: #{forward.1} parent=11 // pred_region
          _
        $region20: #{forward.1} parent=11 // pred_fallthru
          _
        // Predicated region
        $region21: #{forward.1} parent=11 // pred_check
          %p193 = pneg %p104
        $region22: #{forward.1} parent=11 // pred_check_branch
          %195 = sbr.rel (%p193) target = $region24
        $region23: #{forward.1} parent=11 // pred_region
          _
        $region24: #{forward.1} parent=11 // pred_fallthru
          _
        // Predicated region
        $region25: #{forward.1} parent=11 // pred_check
          %p196 = pneg %p125
        $region26: #{forward.1} parent=11 // pred_check_branch
          %198 = sbr.rel (%p196) target = $region28
        $region27: #{forward.1} parent=11 // pred_region
          _
        $region28: #{forward.1} parent=11 // pred_fallthru
          _
        // Predicated region
        $region29: #{forward.1} parent=11 // pred_check
          %p199 = pneg %p146
        $region30: #{forward.1} parent=11 // pred_check_branch
          %201 = sbr.rel (%p199) target = $region32
        $region31: #{forward.1} parent=11 // pred_region
          _
        $region32: #{forward.1} parent=11 // pred_fallthru
          _
      $region12: #{forward.1} parent=5 // pred_fallthru
        _
      %p202 = scmp.lt.s32.totalorder %s15, 2
      // Predicated region
      $region33: #{forward.1} parent=5 // pred_check
        %p203 = pneg %p202
      $region34: #{forward.1} parent=5 // pred_check_branch
        %205 = sbr.rel (%p203) target = $region36
      $region35: #{forward.1} parent=5 // pred_region
        // Predicated region
        $region37: #{forward.1} parent=35 // pred_check
          %p206 = pneg %p35
        $region38: #{forward.1} parent=35 // pred_check_branch
          %208 = sbr.rel (%p206) target = $region40
        $region39: #{forward.1} parent=35 // pred_region
          %s209 = sand.u32 %s25, 1
          %s210 = sand.u32 %s25, 1
          %s211 = smul.addr %s210, 256
          %s212 = scalar_lea.vmem [#allocation2], %s211
          %s213 = smul.u32 4, %s15
          %s214 = smul.addr %s213, 2
          %s215 = smul.addr %s214, 8
          %s216 = scalar_lea.vmem %s0, %s215
          // Predicated region
          $region41: #{forward.1} parent=39 // pred_check
            _
          $region42: #{forward.1} parent=39 // pred_check_branch
            %218 = sbr.rel (0) target = $region44
          $region43: #{forward.1} parent=39 // pred_region
            // Predicated region
            $region45: #{forward.1} parent=43 // pred_check
              _
            $region46: #{forward.1} parent=43 // pred_check_branch
              %220 = sbr.rel (0) target = $region48
            $region47: #{forward.1} parent=43 // pred_region
              loop: start=0, step=1, limit=1
              $region49: #{forward.1} parent=47 // loop_pre_header
                _
              $region50: #{forward.1} parent=47 // loop_header
                %s222 = sphi 0, %s226
                %p223 = scmp.ge.s32.totalorder %s222, 1
                %s227 = sphi %s216, %s216
                %s228 = sphi %s212, %s212
              $region51: #{forward.1} parent=47 // loop_header_branch
                %225 = sbr.rel (%p223) target = $region55
              $region52: #{forward.1} parent=47 // loop_body
                %v229 = vld [vmem:[%s227] sm:$0xff]
                %230 = vst [vmem:[%s228] sm:$0xff] %v229
                %v231 = vld [vmem:[%s227 + $0x8] sm:$0xff]
                %232 = vst [vmem:[%s228 + $0x8] sm:$0xff] %v231
                %v233 = vld [vmem:[%s227 + $0x10] sm:$0xff]
                %234 = vst [vmem:[%s228 + $0x10] sm:$0xff] %v233
                %v235 = vld [vmem:[%s227 + $0x18] sm:$0xff]
                %236 = vst [vmem:[%s228 + $0x18] sm:$0xff] %v235
                %v237 = vld [vmem:[%s227 + $0x20] sm:$0xff]
                %238 = vst [vmem:[%s228 + $0x20] sm:$0xff] %v237
                %v239 = vld [vmem:[%s227 + $0x28] sm:$0xff]
                %240 = vst [vmem:[%s228 + $0x28] sm:$0xff] %v239
                %v241 = vld [vmem:[%s227 + $0x30] sm:$0xff]
                %242 = vst [vmem:[%s228 + $0x30] sm:$0xff] %v241
                %v243 = vld [vmem:[%s227 + $0x38] sm:$0xff]
                %244 = vst [vmem:[%s228 + $0x38] sm:$0xff] %v243
                %v245 = vld [vmem:[%s227 + $0x80] sm:$0xff]
                %246 = vst [vmem:[%s228 + $0x40] sm:$0xff] %v245
                %v247 = vld [vmem:[%s227 + $0x88] sm:$0xff]
                %248 = vst [vmem:[%s228 + $0x48] sm:$0xff] %v247
                %v249 = vld [vmem:[%s227 + $0x90] sm:$0xff]
                %250 = vst [vmem:[%s228 + $0x50] sm:$0xff] %v249
                %v251 = vld [vmem:[%s227 + $0x98] sm:$0xff]
                %252 = vst [vmem:[%s228 + $0x58] sm:$0xff] %v251
                %v253 = vld [vmem:[%s227 + $0xa0] sm:$0xff]
                %254 = vst [vmem:[%s228 + $0x60] sm:$0xff] %v253
                %v255 = vld [vmem:[%s227 + $0xa8] sm:$0xff]
                %256 = vst [vmem:[%s228 + $0x68] sm:$0xff] %v255
                %v257 = vld [vmem:[%s227 + $0xb0] sm:$0xff]
                %258 = vst [vmem:[%s228 + $0x70] sm:$0xff] %v257
                %v259 = vld [vmem:[%s227 + $0xb8] sm:$0xff]
                %260 = vst [vmem:[%s228 + $0x78] sm:$0xff] %v259
                %v261 = vld [vmem:[%s227 + $0x100] sm:$0xff]
                %262 = vst [vmem:[%s228 + $0x80] sm:$0xff] %v261
                %v263 = vld [vmem:[%s227 + $0x108] sm:$0xff]
                %264 = vst [vmem:[%s228 + $0x88] sm:$0xff] %v263
                %v265 = vld [vmem:[%s227 + $0x110] sm:$0xff]
                %266 = vst [vmem:[%s228 + $0x90] sm:$0xff] %v265
                %v267 = vld [vmem:[%s227 + $0x118] sm:$0xff]
                %268 = vst [vmem:[%s228 + $0x98] sm:$0xff] %v267
                %v269 = vld [vmem:[%s227 + $0x120] sm:$0xff]
                %270 = vst [vmem:[%s228 + $0xa0] sm:$0xff] %v269
                %v271 = vld [vmem:[%s227 + $0x128] sm:$0xff]
                %272 = vst [vmem:[%s228 + $0xa8] sm:$0xff] %v271
                %v273 = vld [vmem:[%s227 + $0x130] sm:$0xff]
                %274 = vst [vmem:[%s228 + $0xb0] sm:$0xff] %v273
                %v275 = vld [vmem:[%s227 + $0x138] sm:$0xff]
                %276 = vst [vmem:[%s228 + $0xb8] sm:$0xff] %v275
                %v277 = vld [vmem:[%s227 + $0x180] sm:$0xff]
                %278 = vst [vmem:[%s228 + $0xc0] sm:$0xff] %v277
                %v279 = vld [vmem:[%s227 + $0x188] sm:$0xff]
                %280 = vst [vmem:[%s228 + $0xc8] sm:$0xff] %v279
                %v281 = vld [vmem:[%s227 + $0x190] sm:$0xff]
                %282 = vst [vmem:[%s228 + $0xd0] sm:$0xff] %v281
                %v283 = vld [vmem:[%s227 + $0x198] sm:$0xff]
                %284 = vst [vmem:[%s228 + $0xd8] sm:$0xff] %v283
                %v285 = vld [vmem:[%s227 + $0x1a0] sm:$0xff]
                %286 = vst [vmem:[%s228 + $0xe0] sm:$0xff] %v285
                %v287 = vld [vmem:[%s227 + $0x1a8] sm:$0xff]
                %288 = vst [vmem:[%s228 + $0xe8] sm:$0xff] %v287
                %v289 = vld [vmem:[%s227 + $0x1b0] sm:$0xff]
                %290 = vst [vmem:[%s228 + $0xf0] sm:$0xff] %v289
                %v291 = vld [vmem:[%s227 + $0x1b8] sm:$0xff]
                %292 = vst [vmem:[%s228 + $0xf8] sm:$0xff] %v291
              $region53: #{forward.1} parent=47 // loop_footer
                %s226 = sadd.s32 1, %s222
              $region54: #{forward.1} parent=47 // loop_footer_branch
                %221 = sbr.rel target = $region50
              $region55: #{forward.1} parent=47 // loop_exit
                _
            $region48: #{forward.1} parent=43 // pred_fallthru
              _
            // Predicated region
            $region56: #{forward.1} parent=43 // pred_check
              _
            $region57: #{forward.1} parent=43 // pred_check_branch
              %294 = sbr.rel target = $region59
            $region58: #{forward.1} parent=43 // pred_region
              _
            $region59: #{forward.1} parent=43 // pred_fallthru
              _
          $region44: #{forward.1} parent=39 // pred_fallthru
            _
          %295 = vnop
        $region40: #{forward.1} parent=35 // pred_fallthru
          _
      $region36: #{forward.1} parent=5 // pred_fallthru
        _
      %p296 = scmp.le.s32.totalorder 1, %s15
      %p297 = scmp.lt.s32.totalorder %s15, 3
      %p298 = pnand %p296, %p297
      %p299 = pneg %p298
      // Predicated region
      $region60: #{forward.1} parent=5 // pred_check
        _
      $region61: #{forward.1} parent=5 // pred_check_branch
        %301 = sbr.rel (%p298) target = $region63
      $region62: #{forward.1} parent=5 // pred_region
        %s302 = ssub.s32 %s15, 1
        %s303 = sand.u32 %s28, 1
        %s304 = sand.u32 %s28, 1
        %s305 = smul.addr %s304, 256
        %s306 = scalar_lea.vmem [#allocation2], %s305
        // Predicated region
        $region64: #{forward.1} parent=62 // pred_check
          %p307 = pneg %p41
        $region65: #{forward.1} parent=62 // pred_check_branch
          %309 = sbr.rel (%p307) target = $region67
        $region66: #{forward.1} parent=62 // pred_region
          _
        $region67: #{forward.1} parent=62 // pred_fallthru
          _
        %s310 = sand.u32 %s28, 1
        %s311 = sand.u32 %s28, 1
        %s312 = smul.addr %s311, 256
        %s313 = scalar_lea.vmem [#allocation2], %s312
        %p314 = pneg %p41
        %p315 = pneg %p38
        %p316 = pneg %p62
        %p317 = pneg %p59
        %p318 = pneg %p83
        %p319 = pneg %p80
        %p320 = pneg %p104
        %p321 = pneg %p101
        %p322 = pneg %p125
        %p323 = pneg %p122
        %p324 = pneg %p146
        %p325 = pneg %p143
        %p326 = pneg %p172
        %p327 = pneg %p169
        %s328 = sand.u32 %s159, 1
        %s329 = scalar_lea.sflag [#allocation4], %s328
        %s330 = sand.u32 %s159, 1
        %s331 = smul.addr %s330, 2
        %s332 = scalar_lea.vmem [#allocation3], %s331
        %s333 = smul.u32 4, %s20
        %v334 = vld [vmem:[%s306] sm:$0xff]
        %v335 = vld [vmem:[%s306 + $0x8] sm:$0xff]
        %v336 = vld [vmem:[%s306 + $0x10] sm:$0xff]
        %v337 = vld [vmem:[%s306 + $0x18] sm:$0xff]
        %v338 = vld [vmem:[%s306 + $0x20] sm:$0xff]
        %v339 = vld [vmem:[%s306 + $0x28] sm:$0xff]
        %v340 = vld [vmem:[%s306 + $0x30] sm:$0xff]
        %v341 = vld [vmem:[%s306 + $0x38] sm:$0xff]
        %v342 = vld [vmem:[%s1] sm:$0xff]
        %v343 = vld [vmem:[%s1 + $0x8] sm:$0xff]
        %v344 = vld [vmem:[%s1 + $0x10] sm:$0xff]
        %v345 = vld [vmem:[%s1 + $0x18] sm:$0xff]
        %v346 = vld [vmem:[%s1 + $0x20] sm:$0xff]
        %v347 = vld [vmem:[%s1 + $0x28] sm:$0xff]
        %v348 = vld [vmem:[%s1 + $0x30] sm:$0xff]
        %v349 = vld [vmem:[%s1 + $0x38] sm:$0xff]
        %v350 = vld [vmem:[%s1 + $0x40] sm:$0xff]
        %v351 = vld [vmem:[%s1 + $0x48] sm:$0xff]
        %v352 = vld [vmem:[%s1 + $0x50] sm:$0xff]
        %v353 = vld [vmem:[%s1 + $0x58] sm:$0xff]
        %v354 = vld [vmem:[%s1 + $0x60] sm:$0xff]
        %v355 = vld [vmem:[%s1 + $0x68] sm:$0xff]
        %v356 = vld [vmem:[%s1 + $0x70] sm:$0xff]
        %v357 = vld [vmem:[%s1 + $0x78] sm:$0xff]
        %v358 = vld [vmem:[%s1 + $0x80] sm:$0xff]
        %v359 = vld [vmem:[%s1 + $0x88] sm:$0xff]
        %v360 = vld [vmem:[%s1 + $0x90] sm:$0xff]
        %v361 = vld [vmem:[%s1 + $0x98] sm:$0xff]
        %v362 = vld [vmem:[%s1 + $0xa0] sm:$0xff]
        %v363 = vld [vmem:[%s1 + $0xa8] sm:$0xff]
        %v364 = vld [vmem:[%s1 + $0xb0] sm:$0xff]
        %v365 = vld [vmem:[%s1 + $0xb8] sm:$0xff]
        %v366 = vld [vmem:[%s1 + $0xc0] sm:$0xff]
        %v367 = vld [vmem:[%s1 + $0xc8] sm:$0xff]
        %v368 = vld [vmem:[%s1 + $0xd0] sm:$0xff]
        %v369 = vld [vmem:[%s1 + $0xd8] sm:$0xff]
        %v370 = vld [vmem:[%s1 + $0xe0] sm:$0xff]
        %v371 = vld [vmem:[%s1 + $0xe8] sm:$0xff]
        %v372 = vld [vmem:[%s1 + $0xf0] sm:$0xff]
        %v373 = vld [vmem:[%s1 + $0xf8] sm:$0xff]
        %v374 = vld [vmem:[%s1 + $0x100] sm:$0xff]
        %v375 = vld [vmem:[%s1 + $0x108] sm:$0xff]
        %v376 = vld [vmem:[%s1 + $0x110] sm:$0xff]
        %v377 = vld [vmem:[%s1 + $0x118] sm:$0xff]
        %v378 = vld [vmem:[%s1 + $0x120] sm:$0xff]
        %v379 = vld [vmem:[%s1 + $0x128] sm:$0xff]
        %v380 = vld [vmem:[%s1 + $0x130] sm:$0xff]
        %v381 = vld [vmem:[%s1 + $0x138] sm:$0xff]
        %v382 = vld [vmem:[%s1 + $0x140] sm:$0xff]
        %v383 = vld [vmem:[%s1 + $0x148] sm:$0xff]
        %v384 = vld [vmem:[%s1 + $0x150] sm:$0xff]
        %v385 = vld [vmem:[%s1 + $0x158] sm:$0xff]
        %v386 = vld [vmem:[%s1 + $0x160] sm:$0xff]
        %v387 = vld [vmem:[%s1 + $0x168] sm:$0xff]
        %v388 = vld [vmem:[%s1 + $0x170] sm:$0xff]
        %v389 = vld [vmem:[%s1 + $0x178] sm:$0xff]
        %v390 = vld [vmem:[%s1 + $0x180] sm:$0xff]
        %v391 = vld [vmem:[%s1 + $0x188] sm:$0xff]
        %v392 = vld [vmem:[%s1 + $0x190] sm:$0xff]
        %v393 = vld [vmem:[%s1 + $0x198] sm:$0xff]
        %v394 = vld [vmem:[%s1 + $0x1a0] sm:$0xff]
        %v395 = vld [vmem:[%s1 + $0x1a8] sm:$0xff]
        %v396 = vld [vmem:[%s1 + $0x1b0] sm:$0xff]
        %v397 = vld [vmem:[%s1 + $0x1b8] sm:$0xff]
        %v398 = vld [vmem:[%s1 + $0x1c0] sm:$0xff]
        %v399 = vld [vmem:[%s1 + $0x1c8] sm:$0xff]
        %v400 = vld [vmem:[%s1 + $0x1d0] sm:$0xff]
        %v401 = vld [vmem:[%s1 + $0x1d8] sm:$0xff]
        %v402 = vld [vmem:[%s1 + $0x1e0] sm:$0xff]
        %v403 = vld [vmem:[%s1 + $0x1e8] sm:$0xff]
        %v404 = vld [vmem:[%s1 + $0x1f0] sm:$0xff]
        %v405 = vld [vmem:[%s1 + $0x1f8] sm:$0xff]
        %v406 = vld [vmem:[%s1 + $0x200] sm:$0xff]
        %v407 = vld [vmem:[%s1 + $0x208] sm:$0xff]
        %v408 = vld [vmem:[%s1 + $0x210] sm:$0xff]
        %v409 = vld [vmem:[%s1 + $0x218] sm:$0xff]
        %v410 = vld [vmem:[%s1 + $0x220] sm:$0xff]
        %v411 = vld [vmem:[%s1 + $0x228] sm:$0xff]
        %v412 = vld [vmem:[%s1 + $0x230] sm:$0xff]
        %v413 = vld [vmem:[%s1 + $0x238] sm:$0xff]
        %v414 = vld [vmem:[%s1 + $0x240] sm:$0xff]
        %v415 = vld [vmem:[%s1 + $0x248] sm:$0xff]
        %v416 = vld [vmem:[%s1 + $0x250] sm:$0xff]
        %v417 = vld [vmem:[%s1 + $0x258] sm:$0xff]
        %v418 = vld [vmem:[%s1 + $0x260] sm:$0xff]
        %v419 = vld [vmem:[%s1 + $0x268] sm:$0xff]
        %v420 = vld [vmem:[%s1 + $0x270] sm:$0xff]
        %v421 = vld [vmem:[%s1 + $0x278] sm:$0xff]
        %v422 = vld [vmem:[%s1 + $0x280] sm:$0x3]
        %v423 = vld [vmem:[%s1 + $0x288] sm:$0x3]
        %v424 = vld [vmem:[%s1 + $0x290] sm:$0x3]
        %v425 = vld [vmem:[%s1 + $0x298] sm:$0x3]
        %s426 = scalar_lea.vmem %s306, 64 [#allocation2]
        %v427 = vld [vmem:[%s426] sm:$0xff]
        %v428 = vld [vmem:[%s426 + $0x8] sm:$0xff]
        %v429 = vld [vmem:[%s426 + $0x10] sm:$0xff]
        %v430 = vld [vmem:[%s426 + $0x18] sm:$0xff]
        %v431 = vld [vmem:[%s426 + $0x20] sm:$0xff]
        %v432 = vld [vmem:[%s426 + $0x28] sm:$0xff]
        %v433 = vld [vmem:[%s426 + $0x30] sm:$0xff]
        %v434 = vld [vmem:[%s426 + $0x38] sm:$0xff]
        %s435 = scalar_lea.vmem %s1, 672
        %v436 = vld [vmem:[%s435] sm:$0xff]
        %v437 = vld [vmem:[%s435 + $0x8] sm:$0xff]
        %v438 = vld [vmem:[%s435 + $0x10] sm:$0xff]
        %v439 = vld [vmem:[%s435 + $0x18] sm:$0xff]
        %v440 = vld [vmem:[%s435 + $0x20] sm:$0xff]
        %v441 = vld [vmem:[%s435 + $0x28] sm:$0xff]
        %v442 = vld [vmem:[%s435 + $0x30] sm:$0xff]
        %v443 = vld [vmem:[%s435 + $0x38] sm:$0xff]
        %v444 = vld [vmem:[%s435 + $0x40] sm:$0xff]
        %v445 = vld [vmem:[%s435 + $0x48] sm:$0xff]
        %v446 = vld [vmem:[%s435 + $0x50] sm:$0xff]
        %v447 = vld [vmem:[%s435 + $0x58] sm:$0xff]
        %v448 = vld [vmem:[%s435 + $0x60] sm:$0xff]
        %v449 = vld [vmem:[%s435 + $0x68] sm:$0xff]
        %v450 = vld [vmem:[%s435 + $0x70] sm:$0xff]
        %v451 = vld [vmem:[%s435 + $0x78] sm:$0xff]
        %v452 = vld [vmem:[%s435 + $0x80] sm:$0xff]
        %v453 = vld [vmem:[%s435 + $0x88] sm:$0xff]
        %v454 = vld [vmem:[%s435 + $0x90] sm:$0xff]
        %v455 = vld [vmem:[%s435 + $0x98] sm:$0xff]
        %v456 = vld [vmem:[%s435 + $0xa0] sm:$0xff]
        %v457 = vld [vmem:[%s435 + $0xa8] sm:$0xff]
        %v458 = vld [vmem:[%s435 + $0xb0] sm:$0xff]
        %v459 = vld [vmem:[%s435 + $0xb8] sm:$0xff]
        %v460 = vld [vmem:[%s435 + $0xc0] sm:$0xff]
        %v461 = vld [vmem:[%s435 + $0xc8] sm:$0xff]
        %v462 = vld [vmem:[%s435 + $0xd0] sm:$0xff]
        %v463 = vld [vmem:[%s435 + $0xd8] sm:$0xff]
        %v464 = vld [vmem:[%s435 + $0xe0] sm:$0xff]
        %v465 = vld [vmem:[%s435 + $0xe8] sm:$0xff]
        %v466 = vld [vmem:[%s435 + $0xf0] sm:$0xff]
        %v467 = vld [vmem:[%s435 + $0xf8] sm:$0xff]
        %v468 = vld [vmem:[%s435 + $0x100] sm:$0xff]
        %v469 = vld [vmem:[%s435 + $0x108] sm:$0xff]
        %v470 = vld [vmem:[%s435 + $0x110] sm:$0xff]
        %v471 = vld [vmem:[%s435 + $0x118] sm:$0xff]
        %v472 = vld [vmem:[%s435 + $0x120] sm:$0xff]
        %v473 = vld [vmem:[%s435 + $0x128] sm:$0xff]
        %v474 = vld [vmem:[%s435 + $0x130] sm:$0xff]
        %v475 = vld [vmem:[%s435 + $0x138] sm:$0xff]
        %v476 = vld [vmem:[%s435 + $0x140] sm:$0xff]
        %v477 = vld [vmem:[%s435 + $0x148] sm:$0xff]
        %v478 = vld [vmem:[%s435 + $0x150] sm:$0xff]
        %v479 = vld [vmem:[%s435 + $0x158] sm:$0xff]
        %v480 = vld [vmem:[%s435 + $0x160] sm:$0xff]
        %v481 = vld [vmem:[%s435 + $0x168] sm:$0xff]
        %v482 = vld [vmem:[%s435 + $0x170] sm:$0xff]
        %v483 = vld [vmem:[%s435 + $0x178] sm:$0xff]
        %v484 = vld [vmem:[%s435 + $0x180] sm:$0xff]
        %v485 = vld [vmem:[%s435 + $0x188] sm:$0xff]
        %v486 = vld [vmem:[%s435 + $0x190] sm:$0xff]
        %v487 = vld [vmem:[%s435 + $0x198] sm:$0xff]
        %v488 = vld [vmem:[%s435 + $0x1a0] sm:$0xff]
        %v489 = vld [vmem:[%s435 + $0x1a8] sm:$0xff]
        %v490 = vld [vmem:[%s435 + $0x1b0] sm:$0xff]
        %v491 = vld [vmem:[%s435 + $0x1b8] sm:$0xff]
        %v492 = vld [vmem:[%s435 + $0x1c0] sm:$0xff]
        %v493 = vld [vmem:[%s435 + $0x1c8] sm:$0xff]
        %v494 = vld [vmem:[%s435 + $0x1d0] sm:$0xff]
        %v495 = vld [vmem:[%s435 + $0x1d8] sm:$0xff]
        %v496 = vld [vmem:[%s435 + $0x1e0] sm:$0xff]
        %v497 = vld [vmem:[%s435 + $0x1e8] sm:$0xff]
        %v498 = vld [vmem:[%s435 + $0x1f0] sm:$0xff]
        %v499 = vld [vmem:[%s435 + $0x1f8] sm:$0xff]
        %v500 = vld [vmem:[%s435 + $0x200] sm:$0xff]
        %v501 = vld [vmem:[%s435 + $0x208] sm:$0xff]
        %v502 = vld [vmem:[%s435 + $0x210] sm:$0xff]
        %v503 = vld [vmem:[%s435 + $0x218] sm:$0xff]
        %v504 = vld [vmem:[%s435 + $0x220] sm:$0xff]
        %v505 = vld [vmem:[%s435 + $0x228] sm:$0xff]
        %v506 = vld [vmem:[%s435 + $0x230] sm:$0xff]
        %v507 = vld [vmem:[%s435 + $0x238] sm:$0xff]
        %v508 = vld [vmem:[%s435 + $0x240] sm:$0xff]
        %v509 = vld [vmem:[%s435 + $0x248] sm:$0xff]
        %v510 = vld [vmem:[%s435 + $0x250] sm:$0xff]
        %v511 = vld [vmem:[%s435 + $0x258] sm:$0xff]
        %v512 = vld [vmem:[%s435 + $0x260] sm:$0xff]
        %v513 = vld [vmem:[%s435 + $0x268] sm:$0xff]
        %v514 = vld [vmem:[%s435 + $0x270] sm:$0xff]
        %v515 = vld [vmem:[%s435 + $0x278] sm:$0xff]
        %v516 = vld [vmem:[%s435 + $0x280] sm:$0x3]
        %v517 = vld [vmem:[%s435 + $0x288] sm:$0x3]
        %v518 = vld [vmem:[%s435 + $0x290] sm:$0x3]
        %v519 = vld [vmem:[%s435 + $0x298] sm:$0x3]
        %vm520 = vcmask 277504
        %v522 = vsel %vm520, %v428, 0
        %v525 = vsel %vm520, %v430, 0
        %v528 = vsel %vm520, %v432, 0
        %v531 = vsel %vm520, %v434, 0
        %vm533 = vcmask 1041408
        %v535 = vsel %vm533, %v516, 0
        %v538 = vsel %vm533, %v517, 0
        %v541 = vsel %vm533, %v518, 0
        %v544 = vsel %vm533, %v519, 0
        %546 = vmatprep.subr.mxu0 %v437
        %547 = vmatpush1.msra.mxu0 %v436
        %548 = vmatprep.subr.mxu0 %v441
        %549 = vmatpush1.msra.mxu0 %v440
        %550 = vmatprep.subr.mxu0 %v445
        %551 = vmatpush1.msra.mxu0 %v444
        %552 = vmatprep.subr.mxu0 %v449
        %553 = vmatpush1.msra.mxu0 %v448
        %554 = vmatprep.subr.mxu0 %v453
        %555 = vmatpush1.msra.mxu0 %v452
        %556 = vmatprep.subr.mxu0 %v457
        %557 = vmatpush1.msra.mxu0 %v456
        %558 = vmatprep.subr.mxu0 %v461
        %559 = vmatpush1.msra.mxu0 %v460
        %560 = vmatprep.subr.mxu0 %v465
        %561 = vmatpush1.msra.mxu0 %v464
        %562 = vmatprep.subr.mxu0 %v469
        %563 = vmatpush1.msra.mxu0 %v468
        %564 = vmatprep.subr.mxu0 %v473
        %565 = vmatpush1.msra.mxu0 %v472
        %566 = vmatprep.subr.mxu0 %v477
        %567 = vmatpush1.msra.mxu0 %v476
        %568 = vmatprep.subr.mxu0 %v481
        %569 = vmatpush1.msra.mxu0 %v480
        %570 = vmatprep.subr.mxu0 %v485
        %571 = vmatpush1.msra.mxu0 %v484
        %572 = vmatprep.subr.mxu0 %v489
        %573 = vmatpush1.msra.mxu0 %v488
        %574 = vmatprep.subr.mxu0 %v493
        %575 = vmatpush1.msra.mxu0 %v492
        %576 = vmatprep.subr.mxu0 %v497
        %577 = vmatpush1.msra.mxu0 %v496
        %578 = vmatprep.subr.mxu0 %v501
        %579 = vmatpush1.msra.mxu0 %v500
        %580 = vmatprep.subr.mxu0 %v505
        %581 = vmatpush1.msra.mxu0 %v504
        %582 = vmatprep.subr.mxu0 %v509
        %583 = vmatpush1.msra.mxu0 %v508
        %584 = vmatprep.subr.mxu0 %v513
        %585 = vmatpush1.msra.mxu0 %v512
        %586 = vmatprep.subr.mxu0 %v538
        %587 = vmatpush1.msra.mxu0 %v535
        %588 = vmatprep.subr.mxu0 0.0
        %589 = vmatpush1.msra.mxu0 0.0
        %590 = vmatprep.subr.mxu0 0.0
        %591 = vmatpush1.msra.mxu0 0.0
        %592 = vmatprep.subr.mxu0 0.0
        %593 = vmatpush1.msra.mxu0 0.0
        %594 = vmatprep.subr.mxu0 0.0
        %595 = vmatpush1.msra.mxu0 0.0
        %596 = vmatprep.subr.mxu0 0.0
        %597 = vmatpush1.msra.mxu0 0.0
        %598 = vmatprep.subr.mxu0 0.0
        %599 = vmatpush1.msra.mxu0 0.0
        %600 = vmatprep.subr.mxu0 0.0
        %601 = vmatpush1.msra.mxu0 0.0
        %602 = vmatprep.subr.mxu0 0.0
        %603 = vmatpush1.msra.mxu0 0.0
        %604 = vmatprep.subr.mxu0 0.0
        %605 = vmatpush1.msra.mxu0 0.0
        %606 = vmatprep.subr.mxu0 0.0
        %607 = vmatpush1.msra.mxu0 0.0
        %608 = vmatprep.subr.mxu0 0.0
        %609 = vmatpush1.msra.mxu0 0.0
        %610 = vmatprep.mubr.f32.mxu0 %v522
        %611 = vmatmul.mubr.f32.gmra.mrb[0].mxu0 %v427
        %v612 = vpop.f32.mrb[0].mxu0
        %v613 = vadd.f32 0.0, %v612
        %v614 = vpop.f32.mrb[0].mxu0
        %v615 = vadd.f32 0.0, %v614
        %616 = vmatprep.mubr.f32.mxu0 %v525
        %617 = vmatmul.mubr.f32.gmra.mrb[0].mxu0 %v429
        %v618 = vpop.f32.mrb[0].mxu0
        %v619 = vadd.f32 0.0, %v618
        %v620 = vpop.f32.mrb[0].mxu0
        %v621 = vadd.f32 0.0, %v620
        %622 = vmatprep.mubr.f32.mxu0 %v528
        %623 = vmatmul.mubr.f32.gmra.mrb[0].mxu0 %v431
        %v624 = vpop.f32.mrb[0].mxu0
        %v625 = vadd.f32 0.0, %v624
        %v626 = vpop.f32.mrb[0].mxu0
        %v627 = vadd.f32 0.0, %v626
        %628 = vmatprep.mubr.f32.mxu0 %v531
        %629 = vmatmul.mubr.f32.gmra.mrb[0].mxu0 %v433
        %v630 = vpop.f32.mrb[0].mxu0
        %v631 = vadd.f32 0.0, %v630
        %v632 = vpop.f32.mrb[0].mxu0
        %v633 = vadd.f32 0.0, %v632
        %634 = vdwg.mxu0
        %635 = vmatprep.subr.mxu0 %v439
        %636 = vmatpush1.msra.mxu0 %v438
        %637 = vmatprep.subr.mxu0 %v443
        %638 = vmatpush1.msra.mxu0 %v442
        %639 = vmatprep.subr.mxu0 %v447
        %640 = vmatpush1.msra.mxu0 %v446
        %641 = vmatprep.subr.mxu0 %v451
        %642 = vmatpush1.msra.mxu0 %v450
        %643 = vmatprep.subr.mxu0 %v455
        %644 = vmatpush1.msra.mxu0 %v454
        %645 = vmatprep.subr.mxu0 %v459
        %646 = vmatpush1.msra.mxu0 %v458
        %647 = vmatprep.subr.mxu0 %v463
        %648 = vmatpush1.msra.mxu0 %v462
        %649 = vmatprep.subr.mxu0 %v467
        %650 = vmatpush1.msra.mxu0 %v466
        %651 = vmatprep.subr.mxu0 %v471
        %652 = vmatpush1.msra.mxu0 %v470
        %653 = vmatprep.subr.mxu0 %v475
        %654 = vmatpush1.msra.mxu0 %v474
        %655 = vmatprep.subr.mxu0 %v479
        %656 = vmatpush1.msra.mxu0 %v478
        %657 = vmatprep.subr.mxu0 %v483
        %658 = vmatpush1.msra.mxu0 %v482
        %659 = vmatprep.subr.mxu0 %v487
        %660 = vmatpush1.msra.mxu0 %v486
        %661 = vmatprep.subr.mxu0 %v491
        %662 = vmatpush1.msra.mxu0 %v490
        %663 = vmatprep.subr.mxu0 %v495
        %664 = vmatpush1.msra.mxu0 %v494
        %665 = vmatprep.subr.mxu0 %v499
        %666 = vmatpush1.msra.mxu0 %v498
        %667 = vmatprep.subr.mxu0 %v503
        %668 = vmatpush1.msra.mxu0 %v502
        %669 = vmatprep.subr.mxu0 %v507
        %670 = vmatpush1.msra.mxu0 %v506
        %671 = vmatprep.subr.mxu0 %v511
        %672 = vmatpush1.msra.mxu0 %v510
        %673 = vmatprep.subr.mxu0 %v515
        %674 = vmatpush1.msra.mxu0 %v514
        %675 = vmatprep.subr.mxu0 %v544
        %676 = vmatpush1.msra.mxu0 %v541
        %677 = vmatprep.subr.mxu0 0.0
        %678 = vmatpush1.msra.mxu0 0.0
        %679 = vmatprep.subr.mxu0 0.0
        %680 = vmatpush1.msra.mxu0 0.0
        %681 = vmatprep.subr.mxu0 0.0
        %682 = vmatpush1.msra.mxu0 0.0
        %683 = vmatprep.subr.mxu0 0.0
        %684 = vmatpush1.msra.mxu0 0.0
        %685 = vmatprep.subr.mxu0 0.0
        %686 = vmatpush1.msra.mxu0 0.0
        %687 = vmatprep.subr.mxu0 0.0
        %688 = vmatpush1.msra.mxu0 0.0
        %689 = vmatprep.subr.mxu0 0.0
        %690 = vmatpush1.msra.mxu0 0.0
        %691 = vmatprep.subr.mxu0 0.0
        %692 = vmatpush1.msra.mxu0 0.0
        %693 = vmatprep.subr.mxu0 0.0
        %694 = vmatpush1.msra.mxu0 0.0
        %695 = vmatprep.subr.mxu0 0.0
        %696 = vmatpush1.msra.mxu0 0.0
        %697 = vmatprep.subr.mxu0 0.0
        %698 = vmatpush1.msra.mxu0 0.0
        %699 = vmatprep.mubr.f32.mxu0 %v522
        %700 = vmatmul.mubr.f32.gmra.mrb[0].mxu0 %v427
        %v701 = vpop.f32.mrb[0].mxu0
        %v702 = vadd.f32 0.0, %v701
        %v703 = vpop.f32.mrb[0].mxu0
        %v704 = vadd.f32 0.0, %v703
        %705 = vmatprep.mubr.f32.mxu0 %v525
        %706 = vmatmul.mubr.f32.gmra.mrb[0].mxu0 %v429
        %v707 = vpop.f32.mrb[0].mxu0
        %v708 = vadd.f32 0.0, %v707
        %v709 = vpop.f32.mrb[0].mxu0
        %v710 = vadd.f32 0.0, %v709
        %711 = vmatprep.mubr.f32.mxu0 %v528
        %712 = vmatmul.mubr.f32.gmra.mrb[0].mxu0 %v431
        %v713 = vpop.f32.mrb[0].mxu0
        %v714 = vadd.f32 0.0, %v713
        %v715 = vpop.f32.mrb[0].mxu0
        %v716 = vadd.f32 0.0, %v715
        %717 = vmatprep.mubr.f32.mxu0 %v531
        %718 = vmatmul.mubr.f32.gmra.mrb[0].mxu0 %v433
        %v719 = vpop.f32.mrb[0].mxu0
        %v720 = vadd.f32 0.0, %v719
        %v721 = vpop.f32.mrb[0].mxu0
        %v722 = vadd.f32 0.0, %v721
        %723 = vdwg.mxu0
        %v725 = vsel %vm520, %v335, 0
        %v728 = vsel %vm520, %v337, 0
        %v731 = vsel %vm520, %v339, 0
        %v734 = vsel %vm520, %v341, 0
        %v737 = vsel %vm533, %v422, 0
        %v740 = vsel %vm533, %v423, 0
        %v743 = vsel %vm533, %v424, 0
        %v746 = vsel %vm533, %v425, 0
        %748 = vmatprep.subr.mxu0 %v343
        %749 = vmatpush1.msra.mxu0 %v342
        %750 = vmatprep.subr.mxu0 %v347
        %751 = vmatpush1.msra.mxu0 %v346
        %752 = vmatprep.subr.mxu0 %v351
        %753 = vmatpush1.msra.mxu0 %v350
        %754 = vmatprep.subr.mxu0 %v355
        %755 = vmatpush1.msra.mxu0 %v354
        %756 = vmatprep.subr.mxu0 %v359
        %757 = vmatpush1.msra.mxu0 %v358
        %758 = vmatprep.subr.mxu0 %v363
        %759 = vmatpush1.msra.mxu0 %v362
        %760 = vmatprep.subr.mxu0 %v367
        %761 = vmatpush1.msra.mxu0 %v366
        %762 = vmatprep.subr.mxu0 %v371
        %763 = vmatpush1.msra.mxu0 %v370
        %764 = vmatprep.subr.mxu0 %v375
        %765 = vmatpush1.msra.mxu0 %v374
        %766 = vmatprep.subr.mxu0 %v379
        %767 = vmatpush1.msra.mxu0 %v378
        %768 = vmatprep.subr.mxu0 %v383
        %769 = vmatpush1.msra.mxu0 %v382
        %770 = vmatprep.subr.mxu0 %v387
        %771 = vmatpush1.msra.mxu0 %v386
        %772 = vmatprep.subr.mxu0 %v391
        %773 = vmatpush1.msra.mxu0 %v390
        %774 = vmatprep.subr.mxu0 %v395
        %775 = vmatpush1.msra.mxu0 %v394
        %776 = vmatprep.subr.mxu0 %v399
        %777 = vmatpush1.msra.mxu0 %v398
        %778 = vmatprep.subr.mxu0 %v403
        %779 = vmatpush1.msra.mxu0 %v402
        %780 = vmatprep.subr.mxu0 %v407
        %781 = vmatpush1.msra.mxu0 %v406
        %782 = vmatprep.subr.mxu0 %v411
        %783 = vmatpush1.msra.mxu0 %v410
        %784 = vmatprep.subr.mxu0 %v415
        %785 = vmatpush1.msra.mxu0 %v414
        %786 = vmatprep.subr.mxu0 %v419
        %787 = vmatpush1.msra.mxu0 %v418
        %788 = vmatprep.subr.mxu0 %v740
        %789 = vmatpush1.msra.mxu0 %v737
        %790 = vmatprep.subr.mxu0 0.0
        %791 = vmatpush1.msra.mxu0 0.0
        %792 = vmatprep.subr.mxu0 0.0
        %793 = vmatpush1.msra.mxu0 0.0
        %794 = vmatprep.subr.mxu0 0.0
        %795 = vmatpush1.msra.mxu0 0.0
        %796 = vmatprep.subr.mxu0 0.0
        %797 = vmatpush1.msra.mxu0 0.0
        %798 = vmatprep.subr.mxu0 0.0
        %799 = vmatpush1.msra.mxu0 0.0
        %800 = vmatprep.subr.mxu0 0.0
        %801 = vmatpush1.msra.mxu0 0.0
        %802 = vmatprep.subr.mxu0 0.0
        %803 = vmatpush1.msra.mxu0 0.0
        %804 = vmatprep.subr.mxu0 0.0
        %805 = vmatpush1.msra.mxu0 0.0
        %806 = vmatprep.subr.mxu0 0.0
        %807 = vmatpush1.msra.mxu0 0.0
        %808 = vmatprep.subr.mxu0 0.0
        %809 = vmatpush1.msra.mxu0 0.0
        %810 = vmatprep.subr.mxu0 0.0
        %811 = vmatpush1.msra.mxu0 0.0
        %812 = vmatprep.mubr.f32.mxu0 %v725
        %813 = vmatmul.mubr.f32.gmra.mrb[0].mxu0 %v334
        %v814 = vpop.f32.mrb[0].mxu0
        %v815 = vadd.f32 %v613, %v814
        %v816 = vpop.f32.mrb[0].mxu0
        %v817 = vadd.f32 %v615, %v816
        %818 = vmatprep.mubr.f32.mxu0 %v728
        %819 = vmatmul.mubr.f32.gmra.mrb[0].mxu0 %v336
        %v820 = vpop.f32.mrb[0].mxu0
        %v821 = vadd.f32 %v619, %v820
        %v822 = vpop.f32.mrb[0].mxu0
        %v823 = vadd.f32 %v621, %v822
        %824 = vmatprep.mubr.f32.mxu0 %v731
        %825 = vmatmul.mubr.f32.gmra.mrb[0].mxu0 %v338
        %v826 = vpop.f32.mrb[0].mxu0
        %v827 = vadd.f32 %v625, %v826
        %v828 = vpop.f32.mrb[0].mxu0
        %v829 = vadd.f32 %v627, %v828
        %830 = vmatprep.mubr.f32.mxu0 %v734
        %831 = vmatmul.mubr.f32.gmra.mrb[0].mxu0 %v340
        %v832 = vpop.f32.mrb[0].mxu0
        %v833 = vadd.f32 %v631, %v832
        %v834 = vpop.f32.mrb[0].mxu0
        %v835 = vadd.f32 %v633, %v834
        %836 = vdwg.mxu0
        %837 = vmatprep.subr.mxu0 %v345
        %838 = vmatpush1.msra.mxu0 %v344
        %839 = vmatprep.subr.mxu0 %v349
        %840 = vmatpush1.msra.mxu0 %v348
        %841 = vmatprep.subr.mxu0 %v353
        %842 = vmatpush1.msra.mxu0 %v352
        %843 = vmatprep.subr.mxu0 %v357
        %844 = vmatpush1.msra.mxu0 %v356
        %845 = vmatprep.subr.mxu0 %v361
        %846 = vmatpush1.msra.mxu0 %v360
        %847 = vmatprep.subr.mxu0 %v365
        %848 = vmatpush1.msra.mxu0 %v364
        %849 = vmatprep.subr.mxu0 %v369
        %850 = vmatpush1.msra.mxu0 %v368
        %851 = vmatprep.subr.mxu0 %v373
        %852 = vmatpush1.msra.mxu0 %v372
        %853 = vmatprep.subr.mxu0 %v377
        %854 = vmatpush1.msra.mxu0 %v376
        %855 = vmatprep.subr.mxu0 %v381
        %856 = vmatpush1.msra.mxu0 %v380
        %857 = vmatprep.subr.mxu0 %v385
        %858 = vmatpush1.msra.mxu0 %v384
        %859 = vmatprep.subr.mxu0 %v389
        %860 = vmatpush1.msra.mxu0 %v388
        %861 = vmatprep.subr.mxu0 %v393
        %862 = vmatpush1.msra.mxu0 %v392
        %863 = vmatprep.subr.mxu0 %v397
        %864 = vmatpush1.msra.mxu0 %v396
        %865 = vmatprep.subr.mxu0 %v401
        %866 = vmatpush1.msra.mxu0 %v400
        %867 = vmatprep.subr.mxu0 %v405
        %868 = vmatpush1.msra.mxu0 %v404
        %869 = vmatprep.subr.mxu0 %v409
        %870 = vmatpush1.msra.mxu0 %v408
        %871 = vmatprep.subr.mxu0 %v413
        %872 = vmatpush1.msra.mxu0 %v412
        %873 = vmatprep.subr.mxu0 %v417
        %874 = vmatpush1.msra.mxu0 %v416
        %875 = vmatprep.subr.mxu0 %v421
        %876 = vmatpush1.msra.mxu0 %v420
        %877 = vmatprep.subr.mxu0 %v746
        %878 = vmatpush1.msra.mxu0 %v743
        %879 = vmatprep.subr.mxu0 0.0
        %880 = vmatpush1.msra.mxu0 0.0
        %881 = vmatprep.subr.mxu0 0.0
        %882 = vmatpush1.msra.mxu0 0.0
        %883 = vmatprep.subr.mxu0 0.0
        %884 = vmatpush1.msra.mxu0 0.0
        %885 = vmatprep.subr.mxu0 0.0
        %886 = vmatpush1.msra.mxu0 0.0
        %887 = vmatprep.subr.mxu0 0.0
        %888 = vmatpush1.msra.mxu0 0.0
        %889 = vmatprep.subr.mxu0 0.0
        %890 = vmatpush1.msra.mxu0 0.0
        %891 = vmatprep.subr.mxu0 0.0
        %892 = vmatpush1.msra.mxu0 0.0
        %893 = vmatprep.subr.mxu0 0.0
        %894 = vmatpush1.msra.mxu0 0.0
        %895 = vmatprep.subr.mxu0 0.0
        %896 = vmatpush1.msra.mxu0 0.0
        %897 = vmatprep.subr.mxu0 0.0
        %898 = vmatpush1.msra.mxu0 0.0
        %899 = vmatprep.subr.mxu0 0.0
        %900 = vmatpush1.msra.mxu0 0.0
        %901 = vmatprep.mubr.f32.mxu0 %v725
        %902 = vmatmul.mubr.f32.gmra.mrb[0].mxu0 %v334
        %v903 = vpop.f32.mrb[0].mxu0
        %v904 = vadd.f32 %v702, %v903
        %v905 = vpop.f32.mrb[0].mxu0
        %v906 = vadd.f32 %v704, %v905
        %907 = vmatprep.mubr.f32.mxu0 %v728
        %908 = vmatmul.mubr.f32.gmra.mrb[0].mxu0 %v336
        %v909 = vpop.f32.mrb[0].mxu0
        %v910 = vadd.f32 %v708, %v909
        %v911 = vpop.f32.mrb[0].mxu0
        %v912 = vadd.f32 %v710, %v911
        %913 = vmatprep.mubr.f32.mxu0 %v731
        %914 = vmatmul.mubr.f32.gmra.mrb[0].mxu0 %v338
        %v915 = vpop.f32.mrb[0].mxu0
        %v916 = vadd.f32 %v714, %v915
        %v917 = vpop.f32.mrb[0].mxu0
        %v918 = vadd.f32 %v716, %v917
        %919 = vmatprep.mubr.f32.mxu0 %v734
        %920 = vmatmul.mubr.f32.gmra.mrb[0].mxu0 %v340
        %v921 = vpop.f32.mrb[0].mxu0
        %v922 = vadd.f32 %v720, %v921
        %v923 = vpop.f32.mrb[0].mxu0
        %v924 = vadd.f32 %v722, %v923
        %925 = vdwg.mxu0
        %s926 = scalar_lea.vmem %s306, 128 [#allocation2]
        %v927 = vld [vmem:[%s926] sm:$0xff]
        %v928 = vld [vmem:[%s926 + $0x8] sm:$0xff]
        %v929 = vld [vmem:[%s926 + $0x10] sm:$0xff]
        %v930 = vld [vmem:[%s926 + $0x18] sm:$0xff]
        %v931 = vld [vmem:[%s926 + $0x20] sm:$0xff]
        %v932 = vld [vmem:[%s926 + $0x28] sm:$0xff]
        %v933 = vld [vmem:[%s926 + $0x30] sm:$0xff]
        %v934 = vld [vmem:[%s926 + $0x38] sm:$0xff]
        %s935 = scalar_lea.vmem %s1, 1344
        %v936 = vld [vmem:[%s935] sm:$0xff]
        %v937 = vld [vmem:[%s935 + $0x8] sm:$0xff]
        %v938 = vld [vmem:[%s935 + $0x10] sm:$0xff]
        %v939 = vld [vmem:[%s935 + $0x18] sm:$0xff]
        %v940 = vld [vmem:[%s935 + $0x20] sm:$0xff]
        %v941 = vld [vmem:[%s935 + $0x28] sm:$0xff]
        %v942 = vld [vmem:[%s935 + $0x30] sm:$0xff]
        %v943 = vld [vmem:[%s935 + $0x38] sm:$0xff]
        %v944 = vld [vmem:[%s935 + $0x40] sm:$0xff]
        %v945 = vld [vmem:[%s935 + $0x48] sm:$0xff]
        %v946 = vld [vmem:[%s935 + $0x50] sm:$0xff]
        %v947 = vld [vmem:[%s935 + $0x58] sm:$0xff]
        %v948 = vld [vmem:[%s935 + $0x60] sm:$0xff]
        %v949 = vld [vmem:[%s935 + $0x68] sm:$0xff]
        %v950 = vld [vmem:[%s935 + $0x70] sm:$0xff]
        %v951 = vld [vmem:[%s935 + $0x78] sm:$0xff]
        %v952 = vld [vmem:[%s935 + $0x80] sm:$0xff]
        %v953 = vld [vmem:[%s935 + $0x88] sm:$0xff]
        %v954 = vld [vmem:[%s935 + $0x90] sm:$0xff]
        %v955 = vld [vmem:[%s935 + $0x98] sm:$0xff]
        %v956 = vld [vmem:[%s935 + $0xa0] sm:$0xff]
        %v957 = vld [vmem:[%s935 + $0xa8] sm:$0xff]
        %v958 = vld [vmem:[%s935 + $0xb0] sm:$0xff]
        %v959 = vld [vmem:[%s935 + $0xb8] sm:$0xff]
        %v960 = vld [vmem:[%s935 + $0xc0] sm:$0xff]
        %v961 = vld [vmem:[%s935 + $0xc8] sm:$0xff]
        %v962 = vld [vmem:[%s935 + $0xd0] sm:$0xff]
        %v963 = vld [vmem:[%s935 + $0xd8] sm:$0xff]
        %v964 = vld [vmem:[%s935 + $0xe0] sm:$0xff]
        %v965 = vld [vmem:[%s935 + $0xe8] sm:$0xff]
        %v966 = vld [vmem:[%s935 + $0xf0] sm:$0xff]
        %v967 = vld [vmem:[%s935 + $0xf8] sm:$0xff]
        %v968 = vld [vmem:[%s935 + $0x100] sm:$0xff]
        %v969 = vld [vmem:[%s935 + $0x108] sm:$0xff]
        %v970 = vld [vmem:[%s935 + $0x110] sm:$0xff]
        %v971 = vld [vmem:[%s935 + $0x118] sm:$0xff]
        %v972 = vld [vmem:[%s935 + $0x120] sm:$0xff]
        %v973 = vld [vmem:[%s935 + $0x128] sm:$0xff]
        %v974 = vld [vmem:[%s935 + $0x130] sm:$0xff]
        %v975 = vld [vmem:[%s935 + $0x138] sm:$0xff]
        %v976 = vld [vmem:[%s935 + $0x140] sm:$0xff]
        %v977 = vld [vmem:[%s935 + $0x148] sm:$0xff]
        %v978 = vld [vmem:[%s935 + $0x150] sm:$0xff]
        %v979 = vld [vmem:[%s935 + $0x158] sm:$0xff]
        %v980 = vld [vmem:[%s935 + $0x160] sm:$0xff]
        %v981 = vld [vmem:[%s935 + $0x168] sm:$0xff]
        %v982 = vld [vmem:[%s935 + $0x170] sm:$0xff]
        %v983 = vld [vmem:[%s935 + $0x178] sm:$0xff]
        %v984 = vld [vmem:[%s935 + $0x180] sm:$0xff]
        %v985 = vld [vmem:[%s935 + $0x188] sm:$0xff]
        %v986 = vld [vmem:[%s935 + $0x190] sm:$0xff]
        %v987 = vld [vmem:[%s935 + $0x198] sm:$0xff]
        %v988 = vld [vmem:[%s935 + $0x1a0] sm:$0xff]
        %v989 = vld [vmem:[%s935 + $0x1a8] sm:$0xff]
        %v990 = vld [vmem:[%s935 + $0x1b0] sm:$0xff]
        %v991 = vld [vmem:[%s935 + $0x1b8] sm:$0xff]
        %v992 = vld [vmem:[%s935 + $0x1c0] sm:$0xff]
        %v993 = vld [vmem:[%s935 + $0x1c8] sm:$0xff]
        %v994 = vld [vmem:[%s935 + $0x1d0] sm:$0xff]
        %v995 = vld [vmem:[%s935 + $0x1d8] sm:$0xff]
        %v996 = vld [vmem:[%s935 + $0x1e0] sm:$0xff]
        %v997 = vld [vmem:[%s935 + $0x1e8] sm:$0xff]
        %v998 = vld [vmem:[%s935 + $0x1f0] sm:$0xff]
        %v999 = vld [vmem:[%s935 + $0x1f8] sm:$0xff]
        %v1000 = vld [vmem:[%s935 + $0x200] sm:$0xff]
        %v1001 = vld [vmem:[%s935 + $0x208] sm:$0xff]
        %v1002 = vld [vmem:[%s935 + $0x210] sm:$0xff]
        %v1003 = vld [vmem:[%s935 + $0x218] sm:$0xff]
        %v1004 = vld [vmem:[%s935 + $0x220] sm:$0xff]
        %v1005 = vld [vmem:[%s935 + $0x228] sm:$0xff]
        %v1006 = vld [vmem:[%s935 + $0x230] sm:$0xff]
        %v1007 = vld [vmem:[%s935 + $0x238] sm:$0xff]
        %v1008 = vld [vmem:[%s935 + $0x240] sm:$0xff]
        %v1009 = vld [vmem:[%s935 + $0x248] sm:$0xff]
        %v1010 = vld [vmem:[%s935 + $0x250] sm:$0xff]
        %v1011 = vld [vmem:[%s935 + $0x258] sm:$0xff]
        %v1012 = vld [vmem:[%s935 + $0x260] sm:$0xff]
        %v1013 = vld [vmem:[%s935 + $0x268] sm:$0xff]
        %v1014 = vld [vmem:[%s935 + $0x270] sm:$0xff]
        %v1015 = vld [vmem:[%s935 + $0x278] sm:$0xff]
        %v1016 = vld [vmem:[%s935 + $0x280] sm:$0x3]
        %v1017 = vld [vmem:[%s935 + $0x288] sm:$0x3]
        %v1018 = vld [vmem:[%s935 + $0x290] sm:$0x3]
        %v1019 = vld [vmem:[%s935 + $0x298] sm:$0x3]
        %v1021 = vsel %vm520, %v928, 0
        %v1024 = vsel %vm520, %v930, 0
        %v1027 = vsel %vm520, %v932, 0
        %v1030 = vsel %vm520, %v934, 0
        %v1033 = vsel %vm533, %v1016, 0
        %v1036 = vsel %vm533, %v1017, 0
        %v1039 = vsel %vm533, %v1018, 0
        %v1042 = vsel %vm533, %v1019, 0
        %1044 = vmatprep.subr.mxu0 %v937
        %1045 = vmatpush1.msra.mxu0 %v936
        %1046 = vmatprep.subr.mxu0 %v941
        %1047 = vmatpush1.msra.mxu0 %v940
        %1048 = vmatprep.subr.mxu0 %v945
        %1049 = vmatpush1.msra.mxu0 %v944
        %1050 = vmatprep.subr.mxu0 %v949
        %1051 = vmatpush1.msra.mxu0 %v948
        %1052 = vmatprep.subr.mxu0 %v953
        %1053 = vmatpush1.msra.mxu0 %v952
        %1054 = vmatprep.subr.mxu0 %v957
        %1055 = vmatpush1.msra.mxu0 %v956
        %1056 = vmatprep.subr.mxu0 %v961
        %1057 = vmatpush1.msra.mxu0 %v960
        %1058 = vmatprep.subr.mxu0 %v965
        %1059 = vmatpush1.msra.mxu0 %v964
        %1060 = vmatprep.subr.mxu0 %v969
        %1061 = vmatpush1.msra.mxu0 %v968
        %1062 = vmatprep.subr.mxu0 %v973
        %1063 = vmatpush1.msra.mxu0 %v972
        %1064 = vmatprep.subr.mxu0 %v977
        %1065 = vmatpush1.msra.mxu0 %v976
        %1066 = vmatprep.subr.mxu0 %v981
        %1067 = vmatpush1.msra.mxu0 %v980
        %1068 = vmatprep.subr.mxu0 %v985
        %1069 = vmatpush1.msra.mxu0 %v984
        %1070 = vmatprep.subr.mxu0 %v989
        %1071 = vmatpush1.msra.mxu0 %v988
        %1072 = vmatprep.subr.mxu0 %v993
        %1073 = vmatpush1.msra.mxu0 %v992
        %1074 = vmatprep.subr.mxu0 %v997
        %1075 = vmatpush1.msra.mxu0 %v996
        %1076 = vmatprep.subr.mxu0 %v1001
        %1077 = vmatpush1.msra.mxu0 %v1000
        %1078 = vmatprep.subr.mxu0 %v1005
        %1079 = vmatpush1.msra.mxu0 %v1004
        %1080 = vmatprep.subr.mxu0 %v1009
        %1081 = vmatpush1.msra.mxu0 %v1008
        %1082 = vmatprep.subr.mxu0 %v1013
        %1083 = vmatpush1.msra.mxu0 %v1012
        %1084 = vmatprep.subr.mxu0 %v1036
        %1085 = vmatpush1.msra.mxu0 %v1033
        %1086 = vmatprep.subr.mxu0 0.0
        %1087 = vmatpush1.msra.mxu0 0.0
        %1088 = vmatprep.subr.mxu0 0.0
        %1089 = vmatpush1.msra.mxu0 0.0
        %1090 = vmatprep.subr.mxu0 0.0
        %1091 = vmatpush1.msra.mxu0 0.0
        %1092 = vmatprep.subr.mxu0 0.0
        %1093 = vmatpush1.msra.mxu0 0.0
        %1094 = vmatprep.subr.mxu0 0.0
        %1095 = vmatpush1.msra.mxu0 0.0
        %1096 = vmatprep.subr.mxu0 0.0
        %1097 = vmatpush1.msra.mxu0 0.0
        %1098 = vmatprep.subr.mxu0 0.0
        %1099 = vmatpush1.msra.mxu0 0.0
        %1100 = vmatprep.subr.mxu0 0.0
        %1101 = vmatpush1.msra.mxu0 0.0
        %1102 = vmatprep.subr.mxu0 0.0
        %1103 = vmatpush1.msra.mxu0 0.0
        %1104 = vmatprep.subr.mxu0 0.0
        %1105 = vmatpush1.msra.mxu0 0.0
        %1106 = vmatprep.subr.mxu0 0.0
        %1107 = vmatpush1.msra.mxu0 0.0
        %1108 = vmatprep.mubr.f32.mxu0 %v1021
        %1109 = vmatmul.mubr.f32.gmra.mrb[0].mxu0 %v927
        %v1110 = vpop.f32.mrb[0].mxu0
        %v1111 = vadd.f32 0.0, %v1110
        %v1112 = vpop.f32.mrb[0].mxu0
        %v1113 = vadd.f32 0.0, %v1112
        %1114 = vmatprep.mubr.f32.mxu0 %v1024
        %1115 = vmatmul.mubr.f32.gmra.mrb[0].mxu0 %v929
        %v1116 = vpop.f32.mrb[0].mxu0
        %v1117 = vadd.f32 0.0, %v1116
        %v1118 = vpop.f32.mrb[0].mxu0
        %v1119 = vadd.f32 0.0, %v1118
        %1120 = vmatprep.mubr.f32.mxu0 %v1027
        %1121 = vmatmul.mubr.f32.gmra.mrb[0].mxu0 %v931
        %v1122 = vpop.f32.mrb[0].mxu0
        %v1123 = vadd.f32 0.0, %v1122
        %v1124 = vpop.f32.mrb[0].mxu0
        %v1125 = vadd.f32 0.0, %v1124
        %1126 = vmatprep.mubr.f32.mxu0 %v1030
        %1127 = vmatmul.mubr.f32.gmra.mrb[0].mxu0 %v933
        %v1128 = vpop.f32.mrb[0].mxu0
        %v1129 = vadd.f32 0.0, %v1128
        %v1130 = vpop.f32.mrb[0].mxu0
        %v1131 = vadd.f32 0.0, %v1130
        %1132 = vdwg.mxu0
        %1133 = vmatprep.subr.mxu0 %v939
        %1134 = vmatpush1.msra.mxu0 %v938
        %1135 = vmatprep.subr.mxu0 %v943
        %1136 = vmatpush1.msra.mxu0 %v942
        %1137 = vmatprep.subr.mxu0 %v947
        %1138 = vmatpush1.msra.mxu0 %v946
        %1139 = vmatprep.subr.mxu0 %v951
        %1140 = vmatpush1.msra.mxu0 %v950
        %1141 = vmatprep.subr.mxu0 %v955
        %1142 = vmatpush1.msra.mxu0 %v954
        %1143 = vmatprep.subr.mxu0 %v959
        %1144 = vmatpush1.msra.mxu0 %v958
        %1145 = vmatprep.subr.mxu0 %v963
        %1146 = vmatpush1.msra.mxu0 %v962
        %1147 = vmatprep.subr.mxu0 %v967
        %1148 = vmatpush1.msra.mxu0 %v966
        %1149 = vmatprep.subr.mxu0 %v971
        %1150 = vmatpush1.msra.mxu0 %v970
        %1151 = vmatprep.subr.mxu0 %v975
        %1152 = vmatpush1.msra.mxu0 %v974
        %1153 = vmatprep.subr.mxu0 %v979
        %1154 = vmatpush1.msra.mxu0 %v978
        %1155 = vmatprep.subr.mxu0 %v983
        %1156 = vmatpush1.msra.mxu0 %v982
        %1157 = vmatprep.subr.mxu0 %v987
        %1158 = vmatpush1.msra.mxu0 %v986
        %1159 = vmatprep.subr.mxu0 %v991
        %1160 = vmatpush1.msra.mxu0 %v990
        %1161 = vmatprep.subr.mxu0 %v995
        %1162 = vmatpush1.msra.mxu0 %v994
        %1163 = vmatprep.subr.mxu0 %v999
        %1164 = vmatpush1.msra.mxu0 %v998
        %1165 = vmatprep.subr.mxu0 %v1003
        %1166 = vmatpush1.msra.mxu0 %v1002
        %1167 = vmatprep.subr.mxu0 %v1007
        %1168 = vmatpush1.msra.mxu0 %v1006
        %1169 = vmatprep.subr.mxu0 %v1011
        %1170 = vmatpush1.msra.mxu0 %v1010
        %1171 = vmatprep.subr.mxu0 %v1015
        %1172 = vmatpush1.msra.mxu0 %v1014
        %1173 = vmatprep.subr.mxu0 %v1042
        %1174 = vmatpush1.msra.mxu0 %v1039
        %1175 = vmatprep.subr.mxu0 0.0
        %1176 = vmatpush1.msra.mxu0 0.0
        %1177 = vmatprep.subr.mxu0 0.0
        %1178 = vmatpush1.msra.mxu0 0.0
        %1179 = vmatprep.subr.mxu0 0.0
        %1180 = vmatpush1.msra.mxu0 0.0
        %1181 = vmatprep.subr.mxu0 0.0
        %1182 = vmatpush1.msra.mxu0 0.0
        %1183 = vmatprep.subr.mxu0 0.0
        %1184 = vmatpush1.msra.mxu0 0.0
        %1185 = vmatprep.subr.mxu0 0.0
        %1186 = vmatpush1.msra.mxu0 0.0
        %1187 = vmatprep.subr.mxu0 0.0
        %1188 = vmatpush1.msra.mxu0 0.0
        %1189 = vmatprep.subr.mxu0 0.0
        %1190 = vmatpush1.msra.mxu0 0.0
        %1191 = vmatprep.subr.mxu0 0.0
        %1192 = vmatpush1.msra.mxu0 0.0
        %1193 = vmatprep.subr.mxu0 0.0
        %1194 = vmatpush1.msra.mxu0 0.0
        %1195 = vmatprep.subr.mxu0 0.0
        %1196 = vmatpush1.msra.mxu0 0.0
        %1197 = vmatprep.mubr.f32.mxu0 %v1021
        %1198 = vmatmul.mubr.f32.gmra.mrb[0].mxu0 %v927
        %v1199 = vpop.f32.mrb[0].mxu0
        %v1200 = vadd.f32 0.0, %v1199
        %v1201 = vpop.f32.mrb[0].mxu0
        %v1202 = vadd.f32 0.0, %v1201
        %1203 = vmatprep.mubr.f32.mxu0 %v1024
        %1204 = vmatmul.mubr.f32.gmra.mrb[0].mxu0 %v929
        %v1205 = vpop.f32.mrb[0].mxu0
        %v1206 = vadd.f32 0.0, %v1205
        %v1207 = vpop.f32.mrb[0].mxu0
        %v1208 = vadd.f32 0.0, %v1207
        %1209 = vmatprep.mubr.f32.mxu0 %v1027
        %1210 = vmatmul.mubr.f32.gmra.mrb[0].mxu0 %v931
        %v1211 = vpop.f32.mrb[0].mxu0
        %v1212 = vadd.f32 0.0, %v1211
        %v1213 = vpop.f32.mrb[0].mxu0
        %v1214 = vadd.f32 0.0, %v1213
        %1215 = vmatprep.mubr.f32.mxu0 %v1030
        %1216 = vmatmul.mubr.f32.gmra.mrb[0].mxu0 %v933
        %v1217 = vpop.f32.mrb[0].mxu0
        %v1218 = vadd.f32 0.0, %v1217
        %v1219 = vpop.f32.mrb[0].mxu0
        %v1220 = vadd.f32 0.0, %v1219
        %1221 = vdwg.mxu0
        %v1222 = vadd.f32 %v815, %v1111
        %v1223 = vadd.f32 %v817, %v1113
        %v1224 = vadd.f32 %v904, %v1200
        %v1225 = vadd.f32 %v906, %v1202
        %v1226 = vadd.f32 %v821, %v1117
        %v1227 = vadd.f32 %v823, %v1119
        %v1228 = vadd.f32 %v910, %v1206
        %v1229 = vadd.f32 %v912, %v1208
        %v1230 = vadd.f32 %v827, %v1123
        %v1231 = vadd.f32 %v829, %v1125
        %v1232 = vadd.f32 %v916, %v1212
        %v1233 = vadd.f32 %v918, %v1214
        %v1234 = vadd.f32 %v833, %v1129
        %v1235 = vadd.f32 %v835, %v1131
        %v1236 = vadd.f32 %v922, %v1218
        %v1237 = vadd.f32 %v924, %v1220
        %s1238 = scalar_lea.vmem %s306, 192 [#allocation2]
        %v1239 = vld [vmem:[%s1238] sm:$0xff]
        %v1240 = vld [vmem:[%s1238 + $0x8] sm:$0xff]
        %v1241 = vld [vmem:[%s1238 + $0x10] sm:$0xff]
        %v1242 = vld [vmem:[%s1238 + $0x18] sm:$0xff]
        %v1243 = vld [vmem:[%s1238 + $0x20] sm:$0xff]
        %v1244 = vld [vmem:[%s1238 + $0x28] sm:$0xff]
        %v1245 = vld [vmem:[%s1238 + $0x30] sm:$0xff]
        %v1246 = vld [vmem:[%s1238 + $0x38] sm:$0xff]
        %s1247 = scalar_lea.vmem %s1, 2016
        %v1248 = vld [vmem:[%s1247] sm:$0xff]
        %v1249 = vld [vmem:[%s1247 + $0x8] sm:$0xff]
        %v1250 = vld [vmem:[%s1247 + $0x10] sm:$0xff]
        %v1251 = vld [vmem:[%s1247 + $0x18] sm:$0xff]
        %v1252 = vld [vmem:[%s1247 + $0x20] sm:$0xff]
        %v1253 = vld [vmem:[%s1247 + $0x28] sm:$0xff]
        %v1254 = vld [vmem:[%s1247 + $0x30] sm:$0xff]
        %v1255 = vld [vmem:[%s1247 + $0x38] sm:$0xff]
        %v1256 = vld [vmem:[%s1247 + $0x40] sm:$0xff]
        %v1257 = vld [vmem:[%s1247 + $0x48] sm:$0xff]
        %v1258 = vld [vmem:[%s1247 + $0x50] sm:$0xff]
        %v1259 = vld [vmem:[%s1247 + $0x58] sm:$0xff]
        %v1260 = vld [vmem:[%s1247 + $0x60] sm:$0xff]
        %v1261 = vld [vmem:[%s1247 + $0x68] sm:$0xff]
        %v1262 = vld [vmem:[%s1247 + $0x70] sm:$0xff]
        %v1263 = vld [vmem:[%s1247 + $0x78] sm:$0xff]
        %v1264 = vld [vmem:[%s1247 + $0x80] sm:$0xff]
        %v1265 = vld [vmem:[%s1247 + $0x88] sm:$0xff]
        %v1266 = vld [vmem:[%s1247 + $0x90] sm:$0xff]
        %v1267 = vld [vmem:[%s1247 + $0x98] sm:$0xff]
        %v1268 = vld [vmem:[%s1247 + $0xa0] sm:$0xff]
        %v1269 = vld [vmem:[%s1247 + $0xa8] sm:$0xff]
        %v1270 = vld [vmem:[%s1247 + $0xb0] sm:$0xff]
        %v1271 = vld [vmem:[%s1247 + $0xb8] sm:$0xff]
        %v1272 = vld [vmem:[%s1247 + $0xc0] sm:$0xff]
        %v1273 = vld [vmem:[%s1247 + $0xc8] sm:$0xff]
        %v1274 = vld [vmem:[%s1247 + $0xd0] sm:$0xff]
        %v1275 = vld [vmem:[%s1247 + $0xd8] sm:$0xff]
        %v1276 = vld [vmem:[%s1247 + $0xe0] sm:$0xff]
        %v1277 = vld [vmem:[%s1247 + $0xe8] sm:$0xff]
        %v1278 = vld [vmem:[%s1247 + $0xf0] sm:$0xff]
        %v1279 = vld [vmem:[%s1247 + $0xf8] sm:$0xff]
        %v1280 = vld [vmem:[%s1247 + $0x100] sm:$0xff]
        %v1281 = vld [vmem:[%s1247 + $0x108] sm:$0xff]
        %v1282 = vld [vmem:[%s1247 + $0x110] sm:$0xff]
        %v1283 = vld [vmem:[%s1247 + $0x118] sm:$0xff]
        %v1284 = vld [vmem:[%s1247 + $0x120] sm:$0xff]
        %v1285 = vld [vmem:[%s1247 + $0x128] sm:$0xff]
        %v1286 = vld [vmem:[%s1247 + $0x130] sm:$0xff]
        %v1287 = vld [vmem:[%s1247 + $0x138] sm:$0xff]
        %v1288 = vld [vmem:[%s1247 + $0x140] sm:$0xff]
        %v1289 = vld [vmem:[%s1247 + $0x148] sm:$0xff]
        %v1290 = vld [vmem:[%s1247 + $0x150] sm:$0xff]
        %v1291 = vld [vmem:[%s1247 + $0x158] sm:$0xff]
        %v1292 = vld [vmem:[%s1247 + $0x160] sm:$0xff]
        %v1293 = vld [vmem:[%s1247 + $0x168] sm:$0xff]
        %v1294 = vld [vmem:[%s1247 + $0x170] sm:$0xff]
        %v1295 = vld [vmem:[%s1247 + $0x178] sm:$0xff]
        %v1296 = vld [vmem:[%s1247 + $0x180] sm:$0xff]
        %v1297 = vld [vmem:[%s1247 + $0x188] sm:$0xff]
        %v1298 = vld [vmem:[%s1247 + $0x190] sm:$0xff]
        %v1299 = vld [vmem:[%s1247 + $0x198] sm:$0xff]
        %v1300 = vld [vmem:[%s1247 + $0x1a0] sm:$0xff]
        %v1301 = vld [vmem:[%s1247 + $0x1a8] sm:$0xff]
        %v1302 = vld [vmem:[%s1247 + $0x1b0] sm:$0xff]
        %v1303 = vld [vmem:[%s1247 + $0x1b8] sm:$0xff]
        %v1304 = vld [vmem:[%s1247 + $0x1c0] sm:$0xff]
        %v1305 = vld [vmem:[%s1247 + $0x1c8] sm:$0xff]
        %v1306 = vld [vmem:[%s1247 + $0x1d0] sm:$0xff]
        %v1307 = vld [vmem:[%s1247 + $0x1d8] sm:$0xff]
        %v1308 = vld [vmem:[%s1247 + $0x1e0] sm:$0xff]
        %v1309 = vld [vmem:[%s1247 + $0x1e8] sm:$0xff]
        %v1310 = vld [vmem:[%s1247 + $0x1f0] sm:$0xff]
        %v1311 = vld [vmem:[%s1247 + $0x1f8] sm:$0xff]
        %v1312 = vld [vmem:[%s1247 + $0x200] sm:$0xff]
        %v1313 = vld [vmem:[%s1247 + $0x208] sm:$0xff]
        %v1314 = vld [vmem:[%s1247 + $0x210] sm:$0xff]
        %v1315 = vld [vmem:[%s1247 + $0x218] sm:$0xff]
        %v1316 = vld [vmem:[%s1247 + $0x220] sm:$0xff]
        %v1317 = vld [vmem:[%s1247 + $0x228] sm:$0xff]
        %v1318 = vld [vmem:[%s1247 + $0x230] sm:$0xff]
        %v1319 = vld [vmem:[%s1247 + $0x238] sm:$0xff]
        %v1320 = vld [vmem:[%s1247 + $0x240] sm:$0xff]
        %v1321 = vld [vmem:[%s1247 + $0x248] sm:$0xff]
        %v1322 = vld [vmem:[%s1247 + $0x250] sm:$0xff]
        %v1323 = vld [vmem:[%s1247 + $0x258] sm:$0xff]
        %v1324 = vld [vmem:[%s1247 + $0x260] sm:$0xff]
        %v1325 = vld [vmem:[%s1247 + $0x268] sm:$0xff]
        %v1326 = vld [vmem:[%s1247 + $0x270] sm:$0xff]
        %v1327 = vld [vmem:[%s1247 + $0x278] sm:$0xff]
        %v1328 = vld [vmem:[%s1247 + $0x280] sm:$0x3]
        %v1329 = vld [vmem:[%s1247 + $0x288] sm:$0x3]
        %v1330 = vld [vmem:[%s1247 + $0x290] sm:$0x3]
        %v1331 = vld [vmem:[%s1247 + $0x298] sm:$0x3]
        %v1333 = vsel %vm520, %v1240, 0
        %v1336 = vsel %vm520, %v1242, 0
        %v1339 = vsel %vm520, %v1244, 0
        %v1342 = vsel %vm520, %v1246, 0
        %v1345 = vsel %vm533, %v1328, 0
        %v1348 = vsel %vm533, %v1329, 0
        %v1351 = vsel %vm533, %v1330, 0
        %v1354 = vsel %vm533, %v1331, 0
        %1356 = vmatprep.subr.mxu0 %v1249
        %1357 = vmatpush1.msra.mxu0 %v1248
        %1358 = vmatprep.subr.mxu0 %v1253
        %1359 = vmatpush1.msra.mxu0 %v1252
        %1360 = vmatprep.subr.mxu0 %v1257
        %1361 = vmatpush1.msra.mxu0 %v1256
        %1362 = vmatprep.subr.mxu0 %v1261
        %1363 = vmatpush1.msra.mxu0 %v1260
        %1364 = vmatprep.subr.mxu0 %v1265
        %1365 = vmatpush1.msra.mxu0 %v1264
        %1366 = vmatprep.subr.mxu0 %v1269
        %1367 = vmatpush1.msra.mxu0 %v1268
        %1368 = vmatprep.subr.mxu0 %v1273
        %1369 = vmatpush1.msra.mxu0 %v1272
        %1370 = vmatprep.subr.mxu0 %v1277
        %1371 = vmatpush1.msra.mxu0 %v1276
        %1372 = vmatprep.subr.mxu0 %v1281
        %1373 = vmatpush1.msra.mxu0 %v1280
        %1374 = vmatprep.subr.mxu0 %v1285
        %1375 = vmatpush1.msra.mxu0 %v1284
        %1376 = vmatprep.subr.mxu0 %v1289
        %1377 = vmatpush1.msra.mxu0 %v1288
        %1378 = vmatprep.subr.mxu0 %v1293
        %1379 = vmatpush1.msra.mxu0 %v1292
        %1380 = vmatprep.subr.mxu0 %v1297
        %1381 = vmatpush1.msra.mxu0 %v1296
        %1382 = vmatprep.subr.mxu0 %v1301
        %1383 = vmatpush1.msra.mxu0 %v1300
        %1384 = vmatprep.subr.mxu0 %v1305
        %1385 = vmatpush1.msra.mxu0 %v1304
        %1386 = vmatprep.subr.mxu0 %v1309
        %1387 = vmatpush1.msra.mxu0 %v1308
        %1388 = vmatprep.subr.mxu0 %v1313
        %1389 = vmatpush1.msra.mxu0 %v1312
        %1390 = vmatprep.subr.mxu0 %v1317
        %1391 = vmatpush1.msra.mxu0 %v1316
        %1392 = vmatprep.subr.mxu0 %v1321
        %1393 = vmatpush1.msra.mxu0 %v1320
        %1394 = vmatprep.subr.mxu0 %v1325
        %1395 = vmatpush1.msra.mxu0 %v1324
        %1396 = vmatprep.subr.mxu0 %v1348
        %1397 = vmatpush1.msra.mxu0 %v1345
        %1398 = vmatprep.subr.mxu0 0.0
        %1399 = vmatpush1.msra.mxu0 0.0
        %1400 = vmatprep.subr.mxu0 0.0
        %1401 = vmatpush1.msra.mxu0 0.0
        %1402 = vmatprep.subr.mxu0 0.0
        %1403 = vmatpush1.msra.mxu0 0.0
        %1404 = vmatprep.subr.mxu0 0.0
        %1405 = vmatpush1.msra.mxu0 0.0
        %1406 = vmatprep.subr.mxu0 0.0
        %1407 = vmatpush1.msra.mxu0 0.0
        %1408 = vmatprep.subr.mxu0 0.0
        %1409 = vmatpush1.msra.mxu0 0.0
        %1410 = vmatprep.subr.mxu0 0.0
        %1411 = vmatpush1.msra.mxu0 0.0
        %1412 = vmatprep.subr.mxu0 0.0
        %1413 = vmatpush1.msra.mxu0 0.0
        %1414 = vmatprep.subr.mxu0 0.0
        %1415 = vmatpush1.msra.mxu0 0.0
        %1416 = vmatprep.subr.mxu0 0.0
        %1417 = vmatpush1.msra.mxu0 0.0
        %1418 = vmatprep.subr.mxu0 0.0
        %1419 = vmatpush1.msra.mxu0 0.0
        %1420 = vmatprep.mubr.f32.mxu0 %v1333
        %1421 = vmatmul.mubr.f32.gmra.mrb[0].mxu0 %v1239
        %v1422 = vpop.f32.mrb[0].mxu0
        %v1423 = vadd.f32 0.0, %v1422
        %v1424 = vpop.f32.mrb[0].mxu0
        %v1425 = vadd.f32 0.0, %v1424
        %1426 = vmatprep.mubr.f32.mxu0 %v1336
        %1427 = vmatmul.mubr.f32.gmra.mrb[0].mxu0 %v1241
        %v1428 = vpop.f32.mrb[0].mxu0
        %v1429 = vadd.f32 0.0, %v1428
        %v1430 = vpop.f32.mrb[0].mxu0
        %v1431 = vadd.f32 0.0, %v1430
        %1432 = vmatprep.mubr.f32.mxu0 %v1339
        %1433 = vmatmul.mubr.f32.gmra.mrb[0].mxu0 %v1243
        %v1434 = vpop.f32.mrb[0].mxu0
        %v1435 = vadd.f32 0.0, %v1434
        %v1436 = vpop.f32.mrb[0].mxu0
        %v1437 = vadd.f32 0.0, %v1436
        %1438 = vmatprep.mubr.f32.mxu0 %v1342
        %1439 = vmatmul.mubr.f32.gmra.mrb[0].mxu0 %v1245
        %v1440 = vpop.f32.mrb[0].mxu0
        %v1441 = vadd.f32 0.0, %v1440
        %v1442 = vpop.f32.mrb[0].mxu0
        %v1443 = vadd.f32 0.0, %v1442
        %1444 = vdwg.mxu0
        %1445 = vmatprep.subr.mxu0 %v1251
        %1446 = vmatpush1.msra.mxu0 %v1250
        %1447 = vmatprep.subr.mxu0 %v1255
        %1448 = vmatpush1.msra.mxu0 %v1254
        %1449 = vmatprep.subr.mxu0 %v1259
        %1450 = vmatpush1.msra.mxu0 %v1258
        %1451 = vmatprep.subr.mxu0 %v1263
        %1452 = vmatpush1.msra.mxu0 %v1262
        %1453 = vmatprep.subr.mxu0 %v1267
        %1454 = vmatpush1.msra.mxu0 %v1266
        %1455 = vmatprep.subr.mxu0 %v1271
        %1456 = vmatpush1.msra.mxu0 %v1270
        %1457 = vmatprep.subr.mxu0 %v1275
        %1458 = vmatpush1.msra.mxu0 %v1274
        %1459 = vmatprep.subr.mxu0 %v1279
        %1460 = vmatpush1.msra.mxu0 %v1278
        %1461 = vmatprep.subr.mxu0 %v1283
        %1462 = vmatpush1.msra.mxu0 %v1282
        %1463 = vmatprep.subr.mxu0 %v1287
        %1464 = vmatpush1.msra.mxu0 %v1286
        %1465 = vmatprep.subr.mxu0 %v1291
        %1466 = vmatpush1.msra.mxu0 %v1290
        %1467 = vmatprep.subr.mxu0 %v1295
        %1468 = vmatpush1.msra.mxu0 %v1294
        %1469 = vmatprep.subr.mxu0 %v1299
        %1470 = vmatpush1.msra.mxu0 %v1298
        %1471 = vmatprep.subr.mxu0 %v1303
        %1472 = vmatpush1.msra.mxu0 %v1302
        %1473 = vmatprep.subr.mxu0 %v1307
        %1474 = vmatpush1.msra.mxu0 %v1306
        %1475 = vmatprep.subr.mxu0 %v1311
        %1476 = vmatpush1.msra.mxu0 %v1310
        %1477 = vmatprep.subr.mxu0 %v1315
        %1478 = vmatpush1.msra.mxu0 %v1314
        %1479 = vmatprep.subr.mxu0 %v1319
        %1480 = vmatpush1.msra.mxu0 %v1318
        %1481 = vmatprep.subr.mxu0 %v1323
        %1482 = vmatpush1.msra.mxu0 %v1322
        %1483 = vmatprep.subr.mxu0 %v1327
        %1484 = vmatpush1.msra.mxu0 %v1326
        %1485 = vmatprep.subr.mxu0 %v1354
        %1486 = vmatpush1.msra.mxu0 %v1351
        %1487 = vmatprep.subr.mxu0 0.0
        %1488 = vmatpush1.msra.mxu0 0.0
        %1489 = vmatprep.subr.mxu0 0.0
        %1490 = vmatpush1.msra.mxu0 0.0
        %1491 = vmatprep.subr.mxu0 0.0
        %1492 = vmatpush1.msra.mxu0 0.0
        %1493 = vmatprep.subr.mxu0 0.0
        %1494 = vmatpush1.msra.mxu0 0.0
        %1495 = vmatprep.subr.mxu0 0.0
        %1496 = vmatpush1.msra.mxu0 0.0
        %1497 = vmatprep.subr.mxu0 0.0
        %1498 = vmatpush1.msra.mxu0 0.0
        %1499 = vmatprep.subr.mxu0 0.0
        %1500 = vmatpush1.msra.mxu0 0.0
        %1501 = vmatprep.subr.mxu0 0.0
        %1502 = vmatpush1.msra.mxu0 0.0
        %1503 = vmatprep.subr.mxu0 0.0
        %1504 = vmatpush1.msra.mxu0 0.0
        %1505 = vmatprep.subr.mxu0 0.0
        %1506 = vmatpush1.msra.mxu0 0.0
        %1507 = vmatprep.subr.mxu0 0.0
        %1508 = vmatpush1.msra.mxu0 0.0
        %1509 = vmatprep.mubr.f32.mxu0 %v1333
        %1510 = vmatmul.mubr.f32.gmra.mrb[0].mxu0 %v1239
        %v1511 = vpop.f32.mrb[0].mxu0
        %v1512 = vadd.f32 0.0, %v1511
        %v1513 = vpop.f32.mrb[0].mxu0
        %v1514 = vadd.f32 0.0, %v1513
        %1515 = vmatprep.mubr.f32.mxu0 %v1336
        %1516 = vmatmul.mubr.f32.gmra.mrb[0].mxu0 %v1241
        %v1517 = vpop.f32.mrb[0].mxu0
        %v1518 = vadd.f32 0.0, %v1517
        %v1519 = vpop.f32.mrb[0].mxu0
        %v1520 = vadd.f32 0.0, %v1519
        %1521 = vmatprep.mubr.f32.mxu0 %v1339
        %1522 = vmatmul.mubr.f32.gmra.mrb[0].mxu0 %v1243
        %v1523 = vpop.f32.mrb[0].mxu0
        %v1524 = vadd.f32 0.0, %v1523
        %v1525 = vpop.f32.mrb[0].mxu0
        %v1526 = vadd.f32 0.0, %v1525
        %1527 = vmatprep.mubr.f32.mxu0 %v1342
        %1528 = vmatmul.mubr.f32.gmra.mrb[0].mxu0 %v1245
        %v1529 = vpop.f32.mrb[0].mxu0
        %v1530 = vadd.f32 0.0, %v1529
        %v1531 = vpop.f32.mrb[0].mxu0
        %v1532 = vadd.f32 0.0, %v1531
        %1533 = vdwg.mxu0
        %v1534 = vadd.f32 %v1222, %v1423
        %v1535 = vadd.f32 %v1223, %v1425
        %v1536 = vadd.f32 %v1224, %v1512
        %v1537 = vadd.f32 %v1225, %v1514
        %v1538 = vadd.f32 %v1226, %v1429
        %v1539 = vadd.f32 %v1227, %v1431
        %v1540 = vadd.f32 %v1228, %v1518
        %v1541 = vadd.f32 %v1229, %v1520
        %v1542 = vadd.f32 %v1230, %v1435
        %v1543 = vadd.f32 %v1231, %v1437
        %v1544 = vadd.f32 %v1232, %v1524
        %v1545 = vadd.f32 %v1233, %v1526
        %v1546 = vadd.f32 %v1234, %v1441
        %v1547 = vadd.f32 %v1235, %v1443
        %v1548 = vadd.f32 %v1236, %v1530
        %v1549 = vadd.f32 %v1237, %v1532
        %v1550 = vmax.f32 %v1534, %v1535
        %v1551 = vmax.f32 %v1538, %v1539
        %v1552 = vmax.f32 %v1542, %v1543
        %v1553 = vmax.f32 %v1546, %v1547
        %v1554 = vmax.f32 %v1536, %v1537
        %v1555 = vmax.f32 %v1540, %v1541
        %v1556 = vmax.f32 %v1544, %v1545
        %v1557 = vmax.f32 %v1548, %v1549
        %v1558 = vmax.f32 %v1550, %v1554
        %v1559 = vmax.f32 %v1551, %v1555
        %v1560 = vmax.f32 %v1552, %v1556
        %v1561 = vmax.f32 %v1553, %v1557
        %v1562 = vmax.f32 %v1558, 0.0
        %v1563 = vmax.f32 %v1559, 0.0
        %v1564 = vmax.f32 %v1560, 0.0
        %v1565 = vmax.f32 %v1561, 0.0
        %v1566 = vld [vmem:[%s2] sm:$0xff]
        %v1567 = vld [vmem:[%s2 + $0x8] sm:$0xff]
        %v1568 = vld [vmem:[%s2 + $0x10] sm:$0xff]
        %v1569 = vld [vmem:[%s2 + $0x18] sm:$0xff]
        %v1570 = vld [vmem:[%s2 + $0x20] sm:$0xff]
        %v1571 = vld [vmem:[%s2 + $0x28] sm:$0xff]
        %v1572 = vld [vmem:[%s2 + $0x30] sm:$0xff]
        %v1573 = vld [vmem:[%s2 + $0x38] sm:$0xff]
        %v1574 = vld [vmem:[%s2 + $0x40] sm:$0xff]
        %v1575 = vld [vmem:[%s2 + $0x48] sm:$0xff]
        %v1576 = vld [vmem:[%s2 + $0x50] sm:$0xff]
        %v1577 = vld [vmem:[%s2 + $0x58] sm:$0xff]
        %v1578 = vld [vmem:[%s2 + $0x60] sm:$0xff]
        %v1579 = vld [vmem:[%s2 + $0x68] sm:$0xff]
        %v1580 = vld [vmem:[%s2 + $0x70] sm:$0xff]
        %v1581 = vld [vmem:[%s2 + $0x78] sm:$0xff]
        %1582 = vmatprep.subr.mxu0 0.0
        %1583 = vmatpush1.msra.mxu0 %v1566
        %1584 = vmatprep.subr.mxu0 0.0
        %1585 = vmatpush1.msra.mxu0 %v1567
        %1586 = vmatprep.subr.mxu0 0.0
        %1587 = vmatpush1.msra.mxu0 %v1568
        %1588 = vmatprep.subr.mxu0 0.0
        %1589 = vmatpush1.msra.mxu0 %v1569
        %1590 = vmatprep.subr.mxu0 0.0
        %1591 = vmatpush1.msra.mxu0 %v1570
        %1592 = vmatprep.subr.mxu0 0.0
        %1593 = vmatpush1.msra.mxu0 %v1571
        %1594 = vmatprep.subr.mxu0 0.0
        %1595 = vmatpush1.msra.mxu0 %v1572
        %1596 = vmatprep.subr.mxu0 0.0
        %1597 = vmatpush1.msra.mxu0 %v1573
        %1598 = vmatprep.subr.mxu0 0.0
        %1599 = vmatpush1.msra.mxu0 %v1574
        %1600 = vmatprep.subr.mxu0 0.0
        %1601 = vmatpush1.msra.mxu0 %v1575
        %1602 = vmatprep.subr.mxu0 0.0
        %1603 = vmatpush1.msra.mxu0 %v1576
        %1604 = vmatprep.subr.mxu0 0.0
        %1605 = vmatpush1.msra.mxu0 %v1577
        %1606 = vmatprep.subr.mxu0 0.0
        %1607 = vmatpush1.msra.mxu0 %v1578
        %1608 = vmatprep.subr.mxu0 0.0
        %1609 = vmatpush1.msra.mxu0 %v1579
        %1610 = vmatprep.subr.mxu0 0.0
        %1611 = vmatpush1.msra.mxu0 %v1580
        %1612 = vmatprep.subr.mxu0 0.0
        %1613 = vmatpush1.msra.mxu0 %v1581
        %1614 = vmatprep.subr.mxu0 0.0
        %1615 = vmatpush1.msra.mxu0 0.0
        %1616 = vmatprep.subr.mxu0 0.0
        %1617 = vmatpush1.msra.mxu0 0.0
        %1618 = vmatprep.subr.mxu0 0.0
        %1619 = vmatpush1.msra.mxu0 0.0
        %1620 = vmatprep.subr.mxu0 0.0
        %1621 = vmatpush1.msra.mxu0 0.0
        %1622 = vmatprep.subr.mxu0 0.0
        %1623 = vmatpush1.msra.mxu0 0.0
        %1624 = vmatprep.subr.mxu0 0.0
        %1625 = vmatpush1.msra.mxu0 0.0
        %1626 = vmatprep.subr.mxu0 0.0
        %1627 = vmatpush1.msra.mxu0 0.0
        %1628 = vmatprep.subr.mxu0 0.0
        %1629 = vmatpush1.msra.mxu0 0.0
        %1630 = vmatprep.subr.mxu0 0.0
        %1631 = vmatpush1.msra.mxu0 0.0
        %1632 = vmatprep.subr.mxu0 0.0
        %1633 = vmatpush1.msra.mxu0 0.0
        %1634 = vmatprep.subr.mxu0 0.0
        %1635 = vmatpush1.msra.mxu0 0.0
        %1636 = vmatprep.subr.mxu0 0.0
        %1637 = vmatpush1.msra.mxu0 0.0
        %1638 = vmatprep.subr.mxu0 0.0
        %1639 = vmatpush1.msra.mxu0 0.0
        %1640 = vmatprep.subr.mxu0 0.0
        %1641 = vmatpush1.msra.mxu0 0.0
        %1642 = vmatprep.subr.mxu0 0.0
        %1643 = vmatpush1.msra.mxu0 0.0
        %1644 = vmatprep.subr.mxu0 0.0
        %1645 = vmatpush1.msra.mxu0 0.0
        %1646 = vmatprep.mubr.f32.mxu0 0.0
        %1647 = vmatmul.mubr.f32.gmra.mrb[0].mxu0 %v1562
        %v1648 = vpop.f32.mrb[0].mxu0
        %v1649 = vadd.f32 0.0, %v1648
        %v1650 = vpop.f32.mrb[0].mxu0
        %1651 = vmatprep.mubr.f32.mxu0 0.0
        %1652 = vmatmul.mubr.f32.gmra.mrb[0].mxu0 %v1563
        %v1653 = vpop.f32.mrb[0].mxu0
        %v1654 = vadd.f32 0.0, %v1653
        %v1655 = vpop.f32.mrb[0].mxu0
        %1656 = vmatprep.mubr.f32.mxu0 0.0
        %1657 = vmatmul.mubr.f32.gmra.mrb[0].mxu0 %v1564
        %v1658 = vpop.f32.mrb[0].mxu0
        %v1659 = vadd.f32 0.0, %v1658
        %v1660 = vpop.f32.mrb[0].mxu0
        %1661 = vmatprep.mubr.f32.mxu0 0.0
        %1662 = vmatmul.mubr.f32.gmra.mrb[0].mxu0 %v1565
        %v1663 = vpop.f32.mrb[0].mxu0
        %v1664 = vadd.f32 0.0, %v1663
        %v1665 = vpop.f32.mrb[0].mxu0
        %1666 = vdwg.mxu0
        %s1667 = scalar_lea.vmem %s2, 128
        %v1668 = vld [vmem:[%s1667] sm:$0xff]
        %v1669 = vld [vmem:[%s1667 + $0x8] sm:$0xff]
        %v1670 = vld [vmem:[%s1667 + $0x10] sm:$0xff]
        %v1671 = vld [vmem:[%s1667 + $0x18] sm:$0xff]
        %v1672 = vld [vmem:[%s1667 + $0x20] sm:$0xff]
        %v1673 = vld [vmem:[%s1667 + $0x28] sm:$0xff]
        %v1674 = vld [vmem:[%s1667 + $0x30] sm:$0xff]
        %v1675 = vld [vmem:[%s1667 + $0x38] sm:$0xff]
        %v1676 = vld [vmem:[%s1667 + $0x40] sm:$0xff]
        %v1677 = vld [vmem:[%s1667 + $0x48] sm:$0xff]
        %v1678 = vld [vmem:[%s1667 + $0x50] sm:$0xff]
        %v1679 = vld [vmem:[%s1667 + $0x58] sm:$0xff]
        %v1680 = vld [vmem:[%s1667 + $0x60] sm:$0xff]
        %v1681 = vld [vmem:[%s1667 + $0x68] sm:$0xff]
        %v1682 = vld [vmem:[%s1667 + $0x70] sm:$0xff]
        %v1683 = vld [vmem:[%s1667 + $0x78] sm:$0xff]
        %1684 = vmatprep.subr.mxu0 0.0
        %1685 = vmatpush1.msra.mxu0 %v1668
        %1686 = vmatprep.subr.mxu0 0.0
        %1687 = vmatpush1.msra.mxu0 %v1669
        %1688 = vmatprep.subr.mxu0 0.0
        %1689 = vmatpush1.msra.mxu0 %v1670
        %1690 = vmatprep.subr.mxu0 0.0
        %1691 = vmatpush1.msra.mxu0 %v1671
        %1692 = vmatprep.subr.mxu0 0.0
        %1693 = vmatpush1.msra.mxu0 %v1672
        %1694 = vmatprep.subr.mxu0 0.0
        %1695 = vmatpush1.msra.mxu0 %v1673
        %1696 = vmatprep.subr.mxu0 0.0
        %1697 = vmatpush1.msra.mxu0 %v1674
        %1698 = vmatprep.subr.mxu0 0.0
        %1699 = vmatpush1.msra.mxu0 %v1675
        %1700 = vmatprep.subr.mxu0 0.0
        %1701 = vmatpush1.msra.mxu0 %v1676
        %1702 = vmatprep.subr.mxu0 0.0
        %1703 = vmatpush1.msra.mxu0 %v1677
        %1704 = vmatprep.subr.mxu0 0.0
        %1705 = vmatpush1.msra.mxu0 %v1678
        %1706 = vmatprep.subr.mxu0 0.0
        %1707 = vmatpush1.msra.mxu0 %v1679
        %1708 = vmatprep.subr.mxu0 0.0
        %1709 = vmatpush1.msra.mxu0 %v1680
        %1710 = vmatprep.subr.mxu0 0.0
        %1711 = vmatpush1.msra.mxu0 %v1681
        %1712 = vmatprep.subr.mxu0 0.0
        %1713 = vmatpush1.msra.mxu0 %v1682
        %1714 = vmatprep.subr.mxu0 0.0
        %1715 = vmatpush1.msra.mxu0 %v1683
        %1716 = vmatprep.subr.mxu0 0.0
        %1717 = vmatpush1.msra.mxu0 0.0
        %1718 = vmatprep.subr.mxu0 0.0
        %1719 = vmatpush1.msra.mxu0 0.0
        %1720 = vmatprep.subr.mxu0 0.0
        %1721 = vmatpush1.msra.mxu0 0.0
        %1722 = vmatprep.subr.mxu0 0.0
        %1723 = vmatpush1.msra.mxu0 0.0
        %1724 = vmatprep.subr.mxu0 0.0
        %1725 = vmatpush1.msra.mxu0 0.0
        %1726 = vmatprep.subr.mxu0 0.0
        %1727 = vmatpush1.msra.mxu0 0.0
        %1728 = vmatprep.subr.mxu0 0.0
        %1729 = vmatpush1.msra.mxu0 0.0
        %1730 = vmatprep.subr.mxu0 0.0
        %1731 = vmatpush1.msra.mxu0 0.0
        %1732 = vmatprep.subr.mxu0 0.0
        %1733 = vmatpush1.msra.mxu0 0.0
        %1734 = vmatprep.subr.mxu0 0.0
        %1735 = vmatpush1.msra.mxu0 0.0
        %1736 = vmatprep.subr.mxu0 0.0
        %1737 = vmatpush1.msra.mxu0 0.0
        %1738 = vmatprep.subr.mxu0 0.0
        %1739 = vmatpush1.msra.mxu0 0.0
        %1740 = vmatprep.subr.mxu0 0.0
        %1741 = vmatpush1.msra.mxu0 0.0
        %1742 = vmatprep.subr.mxu0 0.0
        %1743 = vmatpush1.msra.mxu0 0.0
        %1744 = vmatprep.subr.mxu0 0.0
        %1745 = vmatpush1.msra.mxu0 0.0
        %1746 = vmatprep.subr.mxu0 0.0
        %1747 = vmatpush1.msra.mxu0 0.0
        %1748 = vmatprep.mubr.f32.mxu0 0.0
        %1749 = vmatmul.mubr.f32.gmra.mrb[0].mxu0 %v1562
        %v1750 = vpop.f32.mrb[0].mxu0
        %v1751 = vadd.f32 0.0, %v1750
        %v1752 = vpop.f32.mrb[0].mxu0
        %1753 = vmatprep.mubr.f32.mxu0 0.0
        %1754 = vmatmul.mubr.f32.gmra.mrb[0].mxu0 %v1563
        %v1755 = vpop.f32.mrb[0].mxu0
        %v1756 = vadd.f32 0.0, %v1755
        %v1757 = vpop.f32.mrb[0].mxu0
        %1758 = vmatprep.mubr.f32.mxu0 0.0
        %1759 = vmatmul.mubr.f32.gmra.mrb[0].mxu0 %v1564
        %v1760 = vpop.f32.mrb[0].mxu0
        %v1761 = vadd.f32 0.0, %v1760
        %v1762 = vpop.f32.mrb[0].mxu0
        %1763 = vmatprep.mubr.f32.mxu0 0.0
        %1764 = vmatmul.mubr.f32.gmra.mrb[0].mxu0 %v1565
        %v1765 = vpop.f32.mrb[0].mxu0
        %v1766 = vadd.f32 0.0, %v1765
        %v1767 = vpop.f32.mrb[0].mxu0
        %1768 = vdwg.mxu0
        %s1769 = scalar_lea.vmem %s2, 256
        %v1770 = vld [vmem:[%s1769] sm:$0xff]
        %v1771 = vld [vmem:[%s1769 + $0x8] sm:$0xff]
        %v1772 = vld [vmem:[%s1769 + $0x10] sm:$0xff]
        %v1773 = vld [vmem:[%s1769 + $0x18] sm:$0xff]
        %v1774 = vld [vmem:[%s1769 + $0x20] sm:$0xff]
        %v1775 = vld [vmem:[%s1769 + $0x28] sm:$0xff]
        %v1776 = vld [vmem:[%s1769 + $0x30] sm:$0xff]
        %v1777 = vld [vmem:[%s1769 + $0x38] sm:$0xff]
        %v1778 = vld [vmem:[%s1769 + $0x40] sm:$0xff]
        %v1779 = vld [vmem:[%s1769 + $0x48] sm:$0xff]
        %v1780 = vld [vmem:[%s1769 + $0x50] sm:$0xff]
        %v1781 = vld [vmem:[%s1769 + $0x58] sm:$0xff]
        %v1782 = vld [vmem:[%s1769 + $0x60] sm:$0xff]
        %v1783 = vld [vmem:[%s1769 + $0x68] sm:$0xff]
        %v1784 = vld [vmem:[%s1769 + $0x70] sm:$0xff]
        %v1785 = vld [vmem:[%s1769 + $0x78] sm:$0xff]
        %1786 = vmatprep.subr.mxu0 0.0
        %1787 = vmatpush1.msra.mxu0 %v1770
        %1788 = vmatprep.subr.mxu0 0.0
        %1789 = vmatpush1.msra.mxu0 %v1771
        %1790 = vmatprep.subr.mxu0 0.0
        %1791 = vmatpush1.msra.mxu0 %v1772
        %1792 = vmatprep.subr.mxu0 0.0
        %1793 = vmatpush1.msra.mxu0 %v1773
        %1794 = vmatprep.subr.mxu0 0.0
        %1795 = vmatpush1.msra.mxu0 %v1774
        %1796 = vmatprep.subr.mxu0 0.0
        %1797 = vmatpush1.msra.mxu0 %v1775
        %1798 = vmatprep.subr.mxu0 0.0
        %1799 = vmatpush1.msra.mxu0 %v1776
        %1800 = vmatprep.subr.mxu0 0.0
        %1801 = vmatpush1.msra.mxu0 %v1777
        %1802 = vmatprep.subr.mxu0 0.0
        %1803 = vmatpush1.msra.mxu0 %v1778
        %1804 = vmatprep.subr.mxu0 0.0
        %1805 = vmatpush1.msra.mxu0 %v1779
        %1806 = vmatprep.subr.mxu0 0.0
        %1807 = vmatpush1.msra.mxu0 %v1780
        %1808 = vmatprep.subr.mxu0 0.0
        %1809 = vmatpush1.msra.mxu0 %v1781
        %1810 = vmatprep.subr.mxu0 0.0
        %1811 = vmatpush1.msra.mxu0 %v1782
        %1812 = vmatprep.subr.mxu0 0.0
        %1813 = vmatpush1.msra.mxu0 %v1783
        %1814 = vmatprep.subr.mxu0 0.0
        %1815 = vmatpush1.msra.mxu0 %v1784
        %1816 = vmatprep.subr.mxu0 0.0
        %1817 = vmatpush1.msra.mxu0 %v1785
        %1818 = vmatprep.subr.mxu0 0.0
        %1819 = vmatpush1.msra.mxu0 0.0
        %1820 = vmatprep.subr.mxu0 0.0
        %1821 = vmatpush1.msra.mxu0 0.0
        %1822 = vmatprep.subr.mxu0 0.0
        %1823 = vmatpush1.msra.mxu0 0.0
        %1824 = vmatprep.subr.mxu0 0.0
        %1825 = vmatpush1.msra.mxu0 0.0
        %1826 = vmatprep.subr.mxu0 0.0
        %1827 = vmatpush1.msra.mxu0 0.0
        %1828 = vmatprep.subr.mxu0 0.0
        %1829 = vmatpush1.msra.mxu0 0.0
        %1830 = vmatprep.subr.mxu0 0.0
        %1831 = vmatpush1.msra.mxu0 0.0
        %1832 = vmatprep.subr.mxu0 0.0
        %1833 = vmatpush1.msra.mxu0 0.0
        %1834 = vmatprep.subr.mxu0 0.0
        %1835 = vmatpush1.msra.mxu0 0.0
        %1836 = vmatprep.subr.mxu0 0.0
        %1837 = vmatpush1.msra.mxu0 0.0
        %1838 = vmatprep.subr.mxu0 0.0
        %1839 = vmatpush1.msra.mxu0 0.0
        %1840 = vmatprep.subr.mxu0 0.0
        %1841 = vmatpush1.msra.mxu0 0.0
        %1842 = vmatprep.subr.mxu0 0.0
        %1843 = vmatpush1.msra.mxu0 0.0
        %1844 = vmatprep.subr.mxu0 0.0
        %1845 = vmatpush1.msra.mxu0 0.0
        %1846 = vmatprep.subr.mxu0 0.0
        %1847 = vmatpush1.msra.mxu0 0.0
        %1848 = vmatprep.subr.mxu0 0.0
        %1849 = vmatpush1.msra.mxu0 0.0
        %1850 = vmatprep.mubr.f32.mxu0 0.0
        %1851 = vmatmul.mubr.f32.gmra.mrb[0].mxu0 %v1562
        %v1852 = vpop.f32.mrb[0].mxu0
        %v1853 = vadd.f32 0.0, %v1852
        %v1854 = vpop.f32.mrb[0].mxu0
        %1855 = vmatprep.mubr.f32.mxu0 0.0
        %1856 = vmatmul.mubr.f32.gmra.mrb[0].mxu0 %v1563
        %v1857 = vpop.f32.mrb[0].mxu0
        %v1858 = vadd.f32 0.0, %v1857
        %v1859 = vpop.f32.mrb[0].mxu0
        %1860 = vmatprep.mubr.f32.mxu0 0.0
        %1861 = vmatmul.mubr.f32.gmra.mrb[0].mxu0 %v1564
        %v1862 = vpop.f32.mrb[0].mxu0
        %v1863 = vadd.f32 0.0, %v1862
        %v1864 = vpop.f32.mrb[0].mxu0
        %1865 = vmatprep.mubr.f32.mxu0 0.0
        %1866 = vmatmul.mubr.f32.gmra.mrb[0].mxu0 %v1565
        %v1867 = vpop.f32.mrb[0].mxu0
        %v1868 = vadd.f32 0.0, %v1867
        %v1869 = vpop.f32.mrb[0].mxu0
        %1870 = vdwg.mxu0
        %s1871 = scalar_lea.vmem %s2, 384
        %v1872 = vld [vmem:[%s1871] sm:$0xff]
        %v1873 = vld [vmem:[%s1871 + $0x8] sm:$0xff]
        %v1874 = vld [vmem:[%s1871 + $0x10] sm:$0xff]
        %v1875 = vld [vmem:[%s1871 + $0x18] sm:$0xff]
        %v1876 = vld [vmem:[%s1871 + $0x20] sm:$0xff]
        %v1877 = vld [vmem:[%s1871 + $0x28] sm:$0xff]
        %v1878 = vld [vmem:[%s1871 + $0x30] sm:$0xff]
        %v1879 = vld [vmem:[%s1871 + $0x38] sm:$0xff]
        %v1880 = vld [vmem:[%s1871 + $0x40] sm:$0xff]
        %v1881 = vld [vmem:[%s1871 + $0x48] sm:$0xff]
        %v1882 = vld [vmem:[%s1871 + $0x50] sm:$0xff]
        %v1883 = vld [vmem:[%s1871 + $0x58] sm:$0xff]
        %v1884 = vld [vmem:[%s1871 + $0x60] sm:$0xff]
        %v1885 = vld [vmem:[%s1871 + $0x68] sm:$0xff]
        %v1886 = vld [vmem:[%s1871 + $0x70] sm:$0xff]
        %v1887 = vld [vmem:[%s1871 + $0x78] sm:$0xff]
        %1888 = vmatprep.subr.mxu0 0.0
        %1889 = vmatpush1.msra.mxu0 %v1872
        %1890 = vmatprep.subr.mxu0 0.0
        %1891 = vmatpush1.msra.mxu0 %v1873
        %1892 = vmatprep.subr.mxu0 0.0
        %1893 = vmatpush1.msra.mxu0 %v1874
        %1894 = vmatprep.subr.mxu0 0.0
        %1895 = vmatpush1.msra.mxu0 %v1875
        %1896 = vmatprep.subr.mxu0 0.0
        %1897 = vmatpush1.msra.mxu0 %v1876
        %1898 = vmatprep.subr.mxu0 0.0
        %1899 = vmatpush1.msra.mxu0 %v1877
        %1900 = vmatprep.subr.mxu0 0.0
        %1901 = vmatpush1.msra.mxu0 %v1878
        %1902 = vmatprep.subr.mxu0 0.0
        %1903 = vmatpush1.msra.mxu0 %v1879
        %1904 = vmatprep.subr.mxu0 0.0
        %1905 = vmatpush1.msra.mxu0 %v1880
        %1906 = vmatprep.subr.mxu0 0.0
        %1907 = vmatpush1.msra.mxu0 %v1881
        %1908 = vmatprep.subr.mxu0 0.0
        %1909 = vmatpush1.msra.mxu0 %v1882
        %1910 = vmatprep.subr.mxu0 0.0
        %1911 = vmatpush1.msra.mxu0 %v1883
        %1912 = vmatprep.subr.mxu0 0.0
        %1913 = vmatpush1.msra.mxu0 %v1884
        %1914 = vmatprep.subr.mxu0 0.0
        %1915 = vmatpush1.msra.mxu0 %v1885
        %1916 = vmatprep.subr.mxu0 0.0
        %1917 = vmatpush1.msra.mxu0 %v1886
        %1918 = vmatprep.subr.mxu0 0.0
        %1919 = vmatpush1.msra.mxu0 %v1887
        %1920 = vmatprep.subr.mxu0 0.0
        %1921 = vmatpush1.msra.mxu0 0.0
        %1922 = vmatprep.subr.mxu0 0.0
        %1923 = vmatpush1.msra.mxu0 0.0
        %1924 = vmatprep.subr.mxu0 0.0
        %1925 = vmatpush1.msra.mxu0 0.0
        %1926 = vmatprep.subr.mxu0 0.0
        %1927 = vmatpush1.msra.mxu0 0.0
        %1928 = vmatprep.subr.mxu0 0.0
        %1929 = vmatpush1.msra.mxu0 0.0
        %1930 = vmatprep.subr.mxu0 0.0
        %1931 = vmatpush1.msra.mxu0 0.0
        %1932 = vmatprep.subr.mxu0 0.0
        %1933 = vmatpush1.msra.mxu0 0.0
        %1934 = vmatprep.subr.mxu0 0.0
        %1935 = vmatpush1.msra.mxu0 0.0
        %1936 = vmatprep.subr.mxu0 0.0
        %1937 = vmatpush1.msra.mxu0 0.0
        %1938 = vmatprep.subr.mxu0 0.0
        %1939 = vmatpush1.msra.mxu0 0.0
        %1940 = vmatprep.subr.mxu0 0.0
        %1941 = vmatpush1.msra.mxu0 0.0
        %1942 = vmatprep.subr.mxu0 0.0
        %1943 = vmatpush1.msra.mxu0 0.0
        %1944 = vmatprep.subr.mxu0 0.0
        %1945 = vmatpush1.msra.mxu0 0.0
        %1946 = vmatprep.subr.mxu0 0.0
        %1947 = vmatpush1.msra.mxu0 0.0
        %1948 = vmatprep.subr.mxu0 0.0
        %1949 = vmatpush1.msra.mxu0 0.0
        %1950 = vmatprep.subr.mxu0 0.0
        %1951 = vmatpush1.msra.mxu0 0.0
        %1952 = vmatprep.mubr.f32.mxu0 0.0
        %1953 = vmatmul.mubr.f32.gmra.mrb[0].mxu0 %v1562
        %v1954 = vpop.f32.mrb[0].mxu0
        %v1955 = vadd.f32 0.0, %v1954
        %v1956 = vpop.f32.mrb[0].mxu0
        %1957 = vmatprep.mubr.f32.mxu0 0.0
        %1958 = vmatmul.mubr.f32.gmra.mrb[0].mxu0 %v1563
        %v1959 = vpop.f32.mrb[0].mxu0
        %v1960 = vadd.f32 0.0, %v1959
        %v1961 = vpop.f32.mrb[0].mxu0
        %1962 = vmatprep.mubr.f32.mxu0 0.0
        %1963 = vmatmul.mubr.f32.gmra.mrb[0].mxu0 %v1564
        %v1964 = vpop.f32.mrb[0].mxu0
        %v1965 = vadd.f32 0.0, %v1964
        %v1966 = vpop.f32.mrb[0].mxu0
        %1967 = vmatprep.mubr.f32.mxu0 0.0
        %1968 = vmatmul.mubr.f32.gmra.mrb[0].mxu0 %v1565
        %v1969 = vpop.f32.mrb[0].mxu0
        %v1970 = vadd.f32 0.0, %v1969
        %v1971 = vpop.f32.mrb[0].mxu0
        %1972 = vdwg.mxu0
        %s1973 = scalar_lea.vmem %s2, 512
        %v1974 = vld [vmem:[%s1973] sm:$0xff]
        %v1975 = vld [vmem:[%s1973 + $0x8] sm:$0xff]
        %v1976 = vld [vmem:[%s1973 + $0x10] sm:$0xff]
        %v1977 = vld [vmem:[%s1973 + $0x18] sm:$0xff]
        %v1978 = vld [vmem:[%s1973 + $0x20] sm:$0xff]
        %v1979 = vld [vmem:[%s1973 + $0x28] sm:$0xff]
        %v1980 = vld [vmem:[%s1973 + $0x30] sm:$0xff]
        %v1981 = vld [vmem:[%s1973 + $0x38] sm:$0xff]
        %v1982 = vld [vmem:[%s1973 + $0x40] sm:$0xff]
        %v1983 = vld [vmem:[%s1973 + $0x48] sm:$0xff]
        %v1984 = vld [vmem:[%s1973 + $0x50] sm:$0xff]
        %v1985 = vld [vmem:[%s1973 + $0x58] sm:$0xff]
        %v1986 = vld [vmem:[%s1973 + $0x60] sm:$0xff]
        %v1987 = vld [vmem:[%s1973 + $0x68] sm:$0xff]
        %v1988 = vld [vmem:[%s1973 + $0x70] sm:$0xff]
        %v1989 = vld [vmem:[%s1973 + $0x78] sm:$0xff]
        %1990 = vmatprep.subr.mxu0 0.0
        %1991 = vmatpush1.msra.mxu0 %v1974
        %1992 = vmatprep.subr.mxu0 0.0
        %1993 = vmatpush1.msra.mxu0 %v1975
        %1994 = vmatprep.subr.mxu0 0.0
        %1995 = vmatpush1.msra.mxu0 %v1976
        %1996 = vmatprep.subr.mxu0 0.0
        %1997 = vmatpush1.msra.mxu0 %v1977
        %1998 = vmatprep.subr.mxu0 0.0
        %1999 = vmatpush1.msra.mxu0 %v1978
        %2000 = vmatprep.subr.mxu0 0.0
        %2001 = vmatpush1.msra.mxu0 %v1979
        %2002 = vmatprep.subr.mxu0 0.0
        %2003 = vmatpush1.msra.mxu0 %v1980
        %2004 = vmatprep.subr.mxu0 0.0
        %2005 = vmatpush1.msra.mxu0 %v1981
        %2006 = vmatprep.subr.mxu0 0.0
        %2007 = vmatpush1.msra.mxu0 %v1982
        %2008 = vmatprep.subr.mxu0 0.0
        %2009 = vmatpush1.msra.mxu0 %v1983
        %2010 = vmatprep.subr.mxu0 0.0
        %2011 = vmatpush1.msra.mxu0 %v1984
        %2012 = vmatprep.subr.mxu0 0.0
        %2013 = vmatpush1.msra.mxu0 %v1985
        %2014 = vmatprep.subr.mxu0 0.0
        %2015 = vmatpush1.msra.mxu0 %v1986
        %2016 = vmatprep.subr.mxu0 0.0
        %2017 = vmatpush1.msra.mxu0 %v1987
        %2018 = vmatprep.subr.mxu0 0.0
        %2019 = vmatpush1.msra.mxu0 %v1988
        %2020 = vmatprep.subr.mxu0 0.0
        %2021 = vmatpush1.msra.mxu0 %v1989
        %2022 = vmatprep.subr.mxu0 0.0
        %2023 = vmatpush1.msra.mxu0 0.0
        %2024 = vmatprep.subr.mxu0 0.0
        %2025 = vmatpush1.msra.mxu0 0.0
        %2026 = vmatprep.subr.mxu0 0.0
        %2027 = vmatpush1.msra.mxu0 0.0
        %2028 = vmatprep.subr.mxu0 0.0
        %2029 = vmatpush1.msra.mxu0 0.0
        %2030 = vmatprep.subr.mxu0 0.0
        %2031 = vmatpush1.msra.mxu0 0.0
        %2032 = vmatprep.subr.mxu0 0.0
        %2033 = vmatpush1.msra.mxu0 0.0
        %2034 = vmatprep.subr.mxu0 0.0
        %2035 = vmatpush1.msra.mxu0 0.0
        %2036 = vmatprep.subr.mxu0 0.0
        %2037 = vmatpush1.msra.mxu0 0.0
        %2038 = vmatprep.subr.mxu0 0.0
        %2039 = vmatpush1.msra.mxu0 0.0
        %2040 = vmatprep.subr.mxu0 0.0
        %2041 = vmatpush1.msra.mxu0 0.0
        %2042 = vmatprep.subr.mxu0 0.0
        %2043 = vmatpush1.msra.mxu0 0.0
        %2044 = vmatprep.subr.mxu0 0.0
        %2045 = vmatpush1.msra.mxu0 0.0
        %2046 = vmatprep.subr.mxu0 0.0
        %2047 = vmatpush1.msra.mxu0 0.0
        %2048 = vmatprep.subr.mxu0 0.0
        %2049 = vmatpush1.msra.mxu0 0.0
        %2050 = vmatprep.subr.mxu0 0.0
        %2051 = vmatpush1.msra.mxu0 0.0
        %2052 = vmatprep.subr.mxu0 0.0
        %2053 = vmatpush1.msra.mxu0 0.0
        %2054 = vmatprep.mubr.f32.mxu0 0.0
        %2055 = vmatmul.mubr.f32.gmra.mrb[0].mxu0 %v1562
        %v2056 = vpop.f32.mrb[0].mxu0
        %v2057 = vadd.f32 0.0, %v2056
        %v2058 = vpop.f32.mrb[0].mxu0
        %2059 = vmatprep.mubr.f32.mxu0 0.0
        %2060 = vmatmul.mubr.f32.gmra.mrb[0].mxu0 %v1563
        %v2061 = vpop.f32.mrb[0].mxu0
        %v2062 = vadd.f32 0.0, %v2061
        %v2063 = vpop.f32.mrb[0].mxu0
        %2064 = vmatprep.mubr.f32.mxu0 0.0
        %2065 = vmatmul.mubr.f32.gmra.mrb[0].mxu0 %v1564
        %v2066 = vpop.f32.mrb[0].mxu0
        %v2067 = vadd.f32 0.0, %v2066
        %v2068 = vpop.f32.mrb[0].mxu0
        %2069 = vmatprep.mubr.f32.mxu0 0.0
        %2070 = vmatmul.mubr.f32.gmra.mrb[0].mxu0 %v1565
        %v2071 = vpop.f32.mrb[0].mxu0
        %v2072 = vadd.f32 0.0, %v2071
        %v2073 = vpop.f32.mrb[0].mxu0
        %2074 = vdwg.mxu0
        %vm2079 = vcmask 1046528
        %v2080 = vrot.slane %v1751, 1
        %v2081 = vrot.slane %v1756, 1
        %v2082 = vsel %vm2079, %v2080, %v2081
        %v2083 = vrot.slane %v1761, 1
        %v2084 = vrot.slane %v1766, 1
        %v2085 = vsel %vm2079, %v2083, %v2084
        %v2090 = vadd.f32 %v1649, %v2082
        %v2091 = vadd.f32 %v1654, %v2081
        %v2092 = vadd.f32 %v1659, %v2085
        %v2093 = vadd.f32 %v1664, %v2084
        %vm2098 = vcmask 1045504
        %v2099 = vrot.slane %v1853, 2
        %v2100 = vrot.slane %v1858, 2
        %v2101 = vsel %vm2098, %v2099, %v2100
        %v2102 = vrot.slane %v1863, 2
        %v2103 = vrot.slane %v1868, 2
        %v2104 = vsel %vm2098, %v2102, %v2103
        %v2109 = vadd.f32 %v2090, %v2101
        %v2110 = vadd.f32 %v2091, %v2100
        %v2111 = vadd.f32 %v2092, %v2104
        %v2112 = vadd.f32 %v2093, %v2103
        %vm2117 = vcmask 1044480
        %v2118 = vrot.slane %v1955, 3
        %v2119 = vrot.slane %v1960, 3
        %v2120 = vsel %vm2117, %v2118, %v2119
        %v2121 = vrot.slane %v1965, 3
        %v2122 = vrot.slane %v1970, 3
        %v2123 = vsel %vm2117, %v2121, %v2122
        %v2128 = vadd.f32 %v2109, %v2120
        %v2129 = vadd.f32 %v2110, %v2119
        %v2130 = vadd.f32 %v2111, %v2123
        %v2131 = vadd.f32 %v2112, %v2122
        %vm2136 = vcmask 1043456
        %v2137 = vrot.slane %v2057, 4
        %v2138 = vrot.slane %v2062, 4
        %v2139 = vsel %vm2136, %v2137, %v2138
        %v2140 = vrot.slane %v2067, 4
        %v2141 = vrot.slane %v2072, 4
        %v2142 = vsel %vm2136, %v2140, %v2141
        %v2147 = vadd.f32 %v2128, %v2139
        %v2148 = vadd.f32 %v2129, %v2138
        %v2149 = vadd.f32 %v2130, %v2142
        %v2150 = vadd.f32 %v2131, %v2141
        %v2151 = vld [vmem:[%s3] sm:$0x1]
        %v2153 = vlaneseq
        %v2154 = vshrl.u32 %v2153, 7
        %v2155 = vsub.s32 0, %v2154
        %v2156 = vrot.slane %v2151, %v2155
        %v2158 = vadd.f32 %v2147, %v2156
        %v2159 = vadd.f32 %v2148, %v2156
        %v2160 = vadd.f32 %v2149, %v2156
        %v2161 = vadd.f32 %v2150, %v2156
        %v2162 = vmax.f32 %v2158, 0.0
        %v2163 = vmax.f32 %v2159, 0.0
        %v2164 = vmax.f32 %v2160, 0.0
        %v2165 = vmax.f32 %v2161, 0.0
        %vm2166 = vcmask 392192
        %v2167 = vsel %vm2166, %v2162, 0.0
        %vm2168 = vcmask 388096
        %v2169 = vsel %vm2168, %v2163, 0.0
        %v2170 = vadd.f32 %v2167, %v2169
        %v2171 = vrot.slane %v2170, 4
        %v2172 = vadd.f32 %v2170, %v2171
        %v2173 = vrot.slane %v2172, 2
        %v2174 = vadd.f32 %v2172, %v2173
        %v2175 = vrot.slane %v2174, 1
        %v2176 = vadd.f32 %v2174, %v2175
        %v2177 = vsel %vm2166, %v2164, 0.0
        %v2178 = vsel %vm2168, %v2165, 0.0
        %v2179 = vadd.f32 %v2177, %v2178
        %v2180 = vrot.slane %v2179, 4
        %v2181 = vadd.f32 %v2179, %v2180
        %v2182 = vrot.slane %v2181, 2
        %v2183 = vadd.f32 %v2181, %v2182
        %v2184 = vrot.slane %v2183, 1
        %v2185 = vadd.f32 %v2183, %v2184
        %v2186 = vld [vmem:[%s4] sm:$0xff]
        %v2187 = vld [vmem:[%s4 + $0x8] sm:$0xff]
        %v2188 = vld [vmem:[%s4 + $0x10] sm:$0xff]
        %v2189 = vld [vmem:[%s4 + $0x18] sm:$0xff]
        %v2190 = vld [vmem:[%s4 + $0x20] sm:$0xff]
        %v2191 = vld [vmem:[%s4 + $0x28] sm:$0xff]
        %v2192 = vld [vmem:[%s5] sm:$0x1]
        %v2194 = vlaneseq
        %v2195 = vshrl.u32 %v2194, 7
        %v2196 = vsub.s32 0, %v2195
        %v2197 = vrot.slane %v2192, %v2196
        %vm2201 = vcmask 1041409
        %v2202 = vsel %vm2201, %v2185, %v2176
        %v2203 = vsel %vm2166, %v2202, 0
        %2205 = vmatprep.subr.mxu0 0.0
        %2206 = vmatpush1.msra.mxu0 %v2186
        %2207 = vmatprep.subr.mxu0 0.0
        %2208 = vmatpush1.msra.mxu0 %v2187
        %2209 = vmatprep.subr.mxu0 0.0
        %2210 = vmatpush1.msra.mxu0 %v2188
        %2211 = vmatprep.subr.mxu0 0.0
        %2212 = vmatpush1.msra.mxu0 %v2189
        %2213 = vmatprep.subr.mxu0 0.0
        %2214 = vmatpush1.msra.mxu0 %v2190
        %2215 = vmatprep.subr.mxu0 0.0
        %2216 = vmatpush1.msra.mxu0 %v2191
        %2217 = vmatprep.subr.mxu0 0.0
        %2218 = vmatpush1.msra.mxu0 0.0
        %2219 = vmatprep.subr.mxu0 0.0
        %2220 = vmatpush1.msra.mxu0 0.0
        %2221 = vmatprep.subr.mxu0 0.0
        %2222 = vmatpush1.msra.mxu0 0.0
        %2223 = vmatprep.subr.mxu0 0.0
        %2224 = vmatpush1.msra.mxu0 0.0
        %2225 = vmatprep.subr.mxu0 0.0
        %2226 = vmatpush1.msra.mxu0 0.0
        %2227 = vmatprep.subr.mxu0 0.0
        %2228 = vmatpush1.msra.mxu0 0.0
        %2229 = vmatprep.subr.mxu0 0.0
        %2230 = vmatpush1.msra.mxu0 0.0
        %2231 = vmatprep.subr.mxu0 0.0
        %2232 = vmatpush1.msra.mxu0 0.0
        %2233 = vmatprep.subr.mxu0 0.0
        %2234 = vmatpush1.msra.mxu0 0.0
        %2235 = vmatprep.subr.mxu0 0.0
        %2236 = vmatpush1.msra.mxu0 0.0
        %2237 = vmatprep.subr.mxu0 0.0
        %2238 = vmatpush1.msra.mxu0 0.0
        %2239 = vmatprep.subr.mxu0 0.0
        %2240 = vmatpush1.msra.mxu0 0.0
        %2241 = vmatprep.subr.mxu0 0.0
        %2242 = vmatpush1.msra.mxu0 0.0
        %2243 = vmatprep.subr.mxu0 0.0
        %2244 = vmatpush1.msra.mxu0 0.0
        %2245 = vmatprep.subr.mxu0 0.0
        %2246 = vmatpush1.msra.mxu0 0.0
        %2247 = vmatprep.subr.mxu0 0.0
        %2248 = vmatpush1.msra.mxu0 0.0
        %2249 = vmatprep.subr.mxu0 0.0
        %2250 = vmatpush1.msra.mxu0 0.0
        %2251 = vmatprep.subr.mxu0 0.0
        %2252 = vmatpush1.msra.mxu0 0.0
        %2253 = vmatprep.subr.mxu0 0.0
        %2254 = vmatpush1.msra.mxu0 0.0
        %2255 = vmatprep.subr.mxu0 0.0
        %2256 = vmatpush1.msra.mxu0 0.0
        %2257 = vmatprep.subr.mxu0 0.0
        %2258 = vmatpush1.msra.mxu0 0.0
        %2259 = vmatprep.subr.mxu0 0.0
        %2260 = vmatpush1.msra.mxu0 0.0
        %2261 = vmatprep.subr.mxu0 0.0
        %2262 = vmatpush1.msra.mxu0 0.0
        %2263 = vmatprep.subr.mxu0 0.0
        %2264 = vmatpush1.msra.mxu0 0.0
        %2265 = vmatprep.subr.mxu0 0.0
        %2266 = vmatpush1.msra.mxu0 0.0
        %2267 = vmatprep.subr.mxu0 0.0
        %2268 = vmatpush1.msra.mxu0 0.0
        %2269 = vmatprep.mubr.f32.mxu0 0.0
        %2270 = vmatmul.mubr.f32.gmra.mrb[0].mxu0 %v2203
        %v2271 = vpop.f32.mrb[0].mxu0
        %v2272 = vadd.f32 %v2197, %v2271
        %v2273 = vpop.f32.mrb[0].mxu0
        %2274 = vdwg.mxu0
        %vm2275 = vcmask 74752
        %2276 = vst.msk [vmem:[%s332] sm:$0x3] %vm2275, %v2272
        %s2277 = sand.u32 %s159, 1
        %s2278 = scalar_lea.sflag [#allocation4], %s2277
        %s2279 = sand.u32 %s159, 1
        %s2280 = smul.addr %s2279, 2
        %s2281 = scalar_lea.vmem [#allocation3], %s2280
        // Predicated region
        $region68: #{forward.1} parent=62 // pred_check
          %p2282 = pneg %p169
        $region69: #{forward.1} parent=62 // pred_check_branch
          %2284 = sbr.rel (%p2282) target = $region71
        $region70: #{forward.1} parent=62 // pred_region
          %s2286 = ssub.s32 32, 32
          %2287 = vsyncadd %s2278, %s2286
          %s2288 = smul.addr %s20, 32
          %s2289 = scalar_lea.hbm %s6, %s2288
          %s2291 = sshll.u32 %s2281, 4
          %s2292 = int_to_ptr.vmem [resolvable:$true] %s2291
          %2294 = dma.vmem_to_hbm [thread:$0]  %s2292, 32, %s2289, %s2278
        $region71: #{forward.1} parent=62 // pred_fallthru
          _
      $region63: #{forward.1} parent=5 // pred_fallthru
        _
      %p2295 = scmp.le.s32.totalorder 2, %s15
      // Predicated region
      $region72: #{forward.1} parent=5 // pred_check
        %p2296 = pneg %p2295
      $region73: #{forward.1} parent=5 // pred_check_branch
        %2298 = sbr.rel (%p2296) target = $region75
      $region74: #{forward.1} parent=5 // pred_region
        %s2299 = ssub.s32 %s15, 2
        // Predicated region
        $region76: #{forward.1} parent=74 // pred_check
          %p2300 = pneg %p175
        $region77: #{forward.1} parent=74 // pred_check_branch
          %2302 = sbr.rel (%p2300) target = $region79
        $region78: #{forward.1} parent=74 // pred_region
          %s2303 = sand.u32 %s160, 1
          %s2304 = scalar_lea.sflag [#allocation4], %s2303
          %s2305 = sand.u32 %s160, 1
          %s2306 = smul.addr %s2305, 2
          %s2307 = scalar_lea.vmem [#allocation3], %s2306
          %2308 = dma.done %s2304, 32
        $region79: #{forward.1} parent=74 // pred_fallthru
          _
      $region75: #{forward.1} parent=5 // pred_fallthru
        _
    $region6: #{forward.1} parent=1 // loop_footer
      %s19 = sadd.s32 1, %s15
    $region7: #{forward.1} parent=1 // loop_footer_branch
      %14 = sbr.rel target = $region3
    $region8: #{forward.1} parent=1 // loop_exit
      _
    %2309 = vsyncpa [#allocation4], 1
    %s2310 = scalar_lea.sflag [#allocation4], 1
    %2311 = vsyncpa %s2310, 1

</llo_original>
